<compile_context>
chip_gen: v5e
topology: v5e:2x2
jax: 0.10.0
libtpu: 0.0.40
codegen_flags: <defaults>
</compile_context>

<pallas_src>
import functools
import math

import jax
import jax.numpy as jnp
import numpy as np
from jax import lax
from jax.experimental import pallas as pl
from jax.experimental.pallas import tpu as pltpu


def _softmax_lastdim(x):
    m = jnp.max(x, axis=-1, keepdims=True)
    e = jnp.exp(x - m)
    return e / jnp.sum(e, axis=-1, keepdims=True)


# ---------------------------------------------------------------------------
# Kernel A: LayerNorm + padding + landmark pooling + global pinv init scale.
# ---------------------------------------------------------------------------
def _prep_kernel(x_ref, gamma_ref, beta_ref, wq_ref, wk_ref,
                 xpad_ref, xland_ref, iscale_ref, *,
                 heads, num_landmarks, landmark_l, padding, scale, eps):
    b, n, dim = x_ref.shape
    m = num_landmarks
    l = landmark_l

    x = x_ref[...]                                        # (b, n, dim)
    gamma = gamma_ref[...].reshape(1, 1, dim)
    beta = beta_ref[...].reshape(1, 1, dim)

    # LayerNorm (PreNorm.norm), biased variance, eps inside sqrt (torch).
    mean = jnp.mean(x, axis=-1, keepdims=True)
    xc = x - mean
    var = jnp.mean(xc * xc, axis=-1, keepdims=True)
    xn = xc * lax.rsqrt(var + eps) * gamma + beta          # (b, n, dim)

    # Front zero-padding of the sequence (as in NystromAttention.forward).
    if padding > 0:
        xpad_ref[:, :padding, :] = jnp.zeros((b, padding, dim), jnp.float32)
        xpad_ref[:, padding:, :] = xn
    else:
        xpad_ref[...] = xn

    # Landmark pooling of the normalized input.  Landmark i averages padded
    # positions [i*l, (i+1)*l); padded rows are zero so we can pool directly
    # from the unpadded xn with an offset column index.
    rr = lax.broadcasted_iota(jnp.int32, (m, n), 0)
    cc = lax.broadcasted_iota(jnp.int32, (m, n), 1) + padding
    pool = ((cc >= rr * l) & (cc < (rr + 1) * l)).astype(jnp.float32) * (1.0 / l)

    xland_rows = []
    for bi in range(b):
        row = jnp.dot(pool, xn[bi], preferred_element_type=jnp.float32)  # (m, dim)
        xland_ref[bi] = row
        xland_rows.append(row)

    # Global init scale for the Moore-Penrose iteration: max over ALL batches
    # and heads of the |attn2| row-sum and column-sum (as in torch.max(...)).
    max_col = jnp.float32(-jnp.inf)
    max_row = jnp.float32(-jnp.inf)
    for bi in range(b):
        xl = xland_rows[bi]
        for hh in range(heads):
            ql = jnp.dot(xl, wq_ref[hh], preferred_element_type=jnp.float32) * scale
            kl = jnp.dot(xl, wk_ref[hh], preferred_element_type=jnp.float32)
            sim2 = lax.dot_general(ql, kl, (((1,), (1,)), ((), ())),
                                   preferred_element_type=jnp.float32)   # (m, m)
            a2 = jnp.abs(_softmax_lastdim(sim2))
            max_col = jnp.maximum(max_col, jnp.max(jnp.sum(a2, axis=-1)))
            max_row = jnp.maximum(max_row, jnp.max(jnp.sum(a2, axis=-2)))
    iscale_ref[...] = (max_col * max_row).reshape(1, 1)


# ---------------------------------------------------------------------------
# Kernel B: per-(batch, head) Nystrom attention with a resident accumulator
# output block across the head axis.
# ---------------------------------------------------------------------------
def _attn_head_kernel(iscale_ref, xpad_ref, xland_ref, wq_ref, wk_ref, wv_ref,
                      wout_ref, bout_ref, wconv_ref, o_ref, vpad_ref, *,
                      num_landmarks, pinv_iters, scale, conv_kernel):
    m = num_landmarks
    n_pad = xpad_ref.shape[1]
    dh = wq_ref.shape[2]
    dpad = o_ref.shape[2]
    cpad = conv_kernel // 2
    h = pl.program_id(1)
    f32 = jnp.float32

    xp = xpad_ref[0]            # (n_pad, dim)
    xl = xland_ref[0]           # (m, dim)
    wq = wq_ref[0]              # (dim, dh)
    wk = wk_ref[0]
    wv = wv_ref[0]
    wo = wout_ref[0]            # (dh, dpad)

    def mm(a, b):
        return jnp.dot(a, b, preferred_element_type=f32)

    def mmT(a, b):              # a @ b.T  (contract last dims)
        return lax.dot_general(a, b, (((1,), (1,)), ((), ())),
                               preferred_element_type=f32)

    # Per-head projections (recomputed per head; cheap MXU work).
    q = mm(xp, wq) * scale       # (n_pad, dh)
    k = mm(xp, wk)               # (n_pad, dh)
    v = mm(xp, wv)               # (n_pad, dh)
    q_land = mm(xl, wq) * scale  # (m, dh)   (== pooled q, by linearity)
    k_land = mm(xl, wk)          # (m, dh)

    attn1 = _softmax_lastdim(mmT(q, k_land))       # (n_pad, m)
    attn2 = _softmax_lastdim(mmT(q_land, k_land))  # (m, m)
    attn3 = _softmax_lastdim(mmT(q_land, k))       # (m, n_pad)

    # Moore-Penrose iterative pseudo-inverse of attn2 (global init scale).
    ii = lax.broadcasted_iota(jnp.int32, (m, m), 0)
    jj = lax.broadcasted_iota(jnp.int32, (m, m), 1)
    eye = (ii == jj).astype(f32)

    # attn2^T via an MXU contraction on the leading axis (avoids a transpose).
    attn2_t = lax.dot_general(attn2, eye, (((0,), (0,)), ((), ())),
                              preferred_element_type=f32)
    z = attn2_t / iscale_ref[...]                   # (m, m) / (1, 1)
    for _ in range(pinv_iters):
        xz = mm(attn2, z)
        t = 7.0 * eye - xz
        t = 15.0 * eye - mm(xz, t)
        t = 13.0 * eye - mm(xz, t)
        z = 0.25 * mm(z, t)

    # out = (attn1 @ attn2_pinv) @ (attn3 @ v)
    out_h = mm(mm(attn1, z), mm(attn3, v))          # (n_pad, dh)

    # Residual depth-wise conv over the sequence axis (one filter per head,
    # shared across dh, zero 'same' padding).
    if cpad > 0:
        vpad_ref[pl.ds(0, cpad), :] = jnp.zeros((cpad, dh), f32)
        vpad_ref[pl.ds(cpad + n_pad, cpad), :] = jnp.zeros((cpad, dh), f32)
    vpad_ref[pl.ds(cpad, n_pad), :] = v
    wcv = wconv_ref[0]                              # (K, dh)  (weight bcast over dh)
    res = jnp.zeros((n_pad, dh), f32)
    for j in range(conv_kernel):
        res = res + wcv[j:j + 1, :] * vpad_ref[pl.ds(j, n_pad), :]
    out_h = out_h + res

    # This head's contribution to the output projection, accumulated into the
    # resident output block (same block index across the head grid axis).
    contrib = mm(out_h, wo)                         # (n_pad, dpad)

    @pl.when(h == 0)
    def _init():
        o_ref[...] = jnp.broadcast_to(bout_ref[...].reshape(1, 1, dpad),
                                      o_ref.shape)

    o_ref[...] = o_ref[...] + contrib.reshape(1, n_pad, dpad)


# ---------------------------------------------------------------------------
# Wrapper
# ---------------------------------------------------------------------------
def prenorm_nystrom_attention(x, params, *, heads, dim_head, num_landmarks,
                              pinv_iterations, residual_conv_kernel,
                              ln_eps=1e-5):
    b, n, dim = x.shape
    m = num_landmarks
    remainder = n % m
    padding = (m - remainder) if remainder > 0 else 0
    n_pad = n + padding
    l = n_pad // m
    assert l == math.ceil(n / m)
    inner = heads * dim_head
    scale = dim_head ** -0.5
    cpad = residual_conv_kernel // 2
    dpad = ((dim + 127) // 128) * 128       # lane-dense output width

    gamma = params['ln_gamma'].reshape(1, dim).astype(jnp.float32)
    beta = params['ln_beta'].reshape(1, dim).astype(jnp.float32)
    w_qkv = params['w_qkv']                 # (3*inner, dim)   torch Linear layout
    w_out = params['w_out']                 # (dim, inner)
    b_out = params['b_out']                 # (dim,)
    w_conv = params['w_conv']               # (heads, 1, K, 1) torch Conv2d layout

    wqkv_t = w_qkv.T                        # (dim, 3*inner)

    def split_heads(w2d):                   # (dim, inner) -> (heads, dim, dim_head)
        return w2d.reshape(dim, heads, dim_head).transpose(1, 0, 2)

    wq = split_heads(wqkv_t[:, :inner])
    wk = split_heads(wqkv_t[:, inner:2 * inner])
    wv = split_heads(wqkv_t[:, 2 * inner:])
    wout = w_out.T.reshape(heads, dim_head, dim)            # (heads, dh, dim)
    wout_p = jnp.pad(wout, ((0, 0), (0, 0), (0, dpad - dim)))
    bout_p = jnp.pad(b_out, (0, dpad - dim)).reshape(1, dpad)
    wconv2 = w_conv.reshape(heads, residual_conv_kernel)
    wconv_b = jnp.broadcast_to(wconv2[:, :, None],
                               (heads, residual_conv_kernel, dim_head))

    # --- kernel A: LN + pad + landmarks + global pinv init scale ---
    x_pad, x_land, init_scale = pl.pallas_call(
        functools.partial(_prep_kernel, heads=heads, num_landmarks=m,
                          landmark_l=l, padding=padding, scale=scale,
                          eps=ln_eps),
        out_shape=(jax.ShapeDtypeStruct((b, n_pad, dim), jnp.float32),
                   jax.ShapeDtypeStruct((b, m, dim), jnp.float32),
                   jax.ShapeDtypeStruct((1, 1), jnp.float32)),
        in_specs=[pl.BlockSpec(memory_space=pltpu.MemorySpace.VMEM)] * 5,
        out_specs=(pl.BlockSpec(memory_space=pltpu.MemorySpace.VMEM),
                   pl.BlockSpec(memory_space=pltpu.MemorySpace.VMEM),
                   pl.BlockSpec(memory_space=pltpu.MemorySpace.VMEM)),
    )(x.astype(jnp.float32), gamma, beta, wq, wk)

    # --- kernel B: grid over (batch, head), head axis accumulates output ---
    out_p = pl.pallas_call(
        functools.partial(_attn_head_kernel, num_landmarks=m,
                          pinv_iters=pinv_iterations, scale=scale,
                          conv_kernel=residual_conv_kernel),
        out_shape=jax.ShapeDtypeStruct((b, n_pad, dpad), jnp.float32),
        grid_spec=pltpu.PrefetchScalarGridSpec(
            num_scalar_prefetch=0,
            grid=(b, heads),
            in_specs=[
                pl.BlockSpec((1, 1), lambda bi, h: (0, 0)),                  # init_scale
                pl.BlockSpec((1, n_pad, dim), lambda bi, h: (bi, 0, 0)),     # x_pad
                pl.BlockSpec((1, m, dim), lambda bi, h: (bi, 0, 0)),         # x_land
                pl.BlockSpec((1, dim, dim_head), lambda bi, h: (h, 0, 0)),   # wq
                pl.BlockSpec((1, dim, dim_head), lambda bi, h: (h, 0, 0)),   # wk
                pl.BlockSpec((1, dim, dim_head), lambda bi, h: (h, 0, 0)),   # wv
                pl.BlockSpec((1, dim_head, dpad), lambda bi, h: (h, 0, 0)),  # wout
                pl.BlockSpec((1, dpad), lambda bi, h: (0, 0)),               # bias
                pl.BlockSpec((1, residual_conv_kernel, dim_head),
                             lambda bi, h: (h, 0, 0)),                       # wconv
            ],
            out_specs=pl.BlockSpec((1, n_pad, dpad), lambda bi, h: (bi, 0, 0)),
            scratch_shapes=[
                pltpu.VMEM((n_pad + 2 * cpad, dim_head), jnp.float32),
            ]),
        compiler_params=pltpu.CompilerParams(
            dimension_semantics=("parallel", "arbitrary"),
            vmem_limit_bytes=64 * 1024 * 1024),
    )(init_scale, x_pad, x_land, wq, wk, wv, wout_p, bout_p, wconv_b)

    # drop the front sequence padding and the output lane padding
    return out_p[:, padding:, :dim]


# ---------------------------------------------------------------------------
# Pure-JAX reference (mirrors the PyTorch PreNorm(NystromAttention) forward).
# ---------------------------------------------------------------------------
def _reference_forward(x, params, *, heads, dim_head, num_landmarks,
                       pinv_iterations, residual_conv_kernel, ln_eps=1e-5):
    b, n, dim = x.shape
    m = num_landmarks
    remainder = n % m
    padding = (m - remainder) if remainder > 0 else 0
    n_pad = n + padding
    l = n_pad // m
    inner = heads * dim_head
    scale = dim_head ** -0.5

    mean = jnp.mean(x, -1, keepdims=True)
    var = jnp.mean((x - mean) ** 2, -1, keepdims=True)
    xn = (x - mean) / jnp.sqrt(var + ln_eps) * params['ln_gamma'] + params['ln_beta']
    xp = jnp.pad(xn, ((0, 0), (padding, 0), (0, 0)))

    qkv = xp @ params['w_qkv'].T
    q, k, v = jnp.split(qkv, 3, axis=-1)

    def to_heads(t):
        return t.reshape(b, n_pad, heads, dim_head).transpose(0, 2, 1, 3)

    q, k, v = map(to_heads, (q, k, v))
    q = q * scale

    ql = q.reshape(b, heads, m, l, dim_head).sum(3) / l
    kl = k.reshape(b, heads, m, l, dim_head).sum(3) / l

    sim1 = jnp.einsum('bhid,bhjd->bhij', q, kl)
    sim2 = jnp.einsum('bhid,bhjd->bhij', ql, kl)
    sim3 = jnp.einsum('bhid,bhjd->bhij', ql, k)
    a1, a2, a3 = (jax.nn.softmax(s, axis=-1) for s in (sim1, sim2, sim3))

    absa = jnp.abs(a2)
    z = jnp.swapaxes(a2, -1, -2) / (jnp.max(absa.sum(-1)) * jnp.max(absa.sum(-2)))
    eye = jnp.eye(m, dtype=x.dtype)
    for _ in range(pinv_iterations):
        xz = a2 @ z
        z = 0.25 * z @ (13. * eye - (xz @ (15. * eye - (xz @ (7. * eye - xz)))))

    out = (a1 @ z) @ (a3 @ v)                                 # (b, h, n_pad, dh)

    wconv = params['w_conv'].reshape(heads, residual_conv_kernel)
    cpad = residual_conv_kernel // 2
    vpad = jnp.pad(v, ((0, 0), (0, 0), (cpad, cpad), (0, 0)))
    res = jnp.zeros_like(out)
    for j in range(residual_conv_kernel):
        res = res + wconv[:, j].reshape(1, heads, 1, 1) * vpad[:, :, j:j + n_pad, :]
    out = out + res

    out = out.transpose(0, 2, 1, 3).reshape(b, n_pad, inner)
    out = out @ params['w_out'].T + params['b_out']
    return out[:, -n:]


if __name__ == "__main__":
    key = jax.random.PRNGKey(0)
    b, n, dim = 2, 14, 32
    heads, dim_head = 4, 8
    num_landmarks = 4
    pinv_iterations = 6
    residual_conv_kernel = 5
    inner = heads * dim_head

    ks = jax.random.split(key, 7)
    x = jax.random.normal(ks[0], (b, n, dim), jnp.float32)
    params = {
        'ln_gamma': 1.0 + 0.1 * jax.random.normal(ks[1], (dim,), jnp.float32),
        'ln_beta': 0.1 * jax.random.normal(ks[2], (dim,), jnp.float32),
        'w_qkv': 0.1 * jax.random.normal(ks[3], (3 * inner, dim), jnp.float32),
        'w_out': 0.1 * jax.random.normal(ks[4], (dim, inner), jnp.float32),
        'b_out': 0.1 * jax.random.normal(ks[5], (dim,), jnp.float32),
        'w_conv': 0.1 * jax.random.normal(
            ks[6], (heads, 1, residual_conv_kernel, 1), jnp.float32),
    }

    out = prenorm_nystrom_attention(
        x, params, heads=heads, dim_head=dim_head,
        num_landmarks=num_landmarks, pinv_iterations=pinv_iterations,
        residual_conv_kernel=residual_conv_kernel)
    out = jax.block_until_ready(out)
    assert out.shape == (b, n, dim), out.shape
    assert out.dtype == jnp.float32

    ref = jax.block_until_ready(_reference_forward(
        x, params, heads=heads, dim_head=dim_head,
        num_landmarks=num_landmarks, pinv_iterations=pinv_iterations,
        residual_conv_kernel=residual_conv_kernel))
    np.testing.assert_allclose(np.asarray(out), np.asarray(ref),
                               rtol=5e-3, atol=5e-3)
    print("KERNEL_OK")
</pallas_src>

<mosaic_0001>
module attributes {stable_mosaic.version = 11 : i64} {
  func.func @_prep_kernel(%arg0: memref<2x14x32xf32, #tpu.memory_space<vmem>>, %arg1: memref<1x32xf32, #tpu.memory_space<vmem>>, %arg2: memref<1x32xf32, #tpu.memory_space<vmem>>, %arg3: memref<4x32x8xf32, #tpu.memory_space<vmem>>, %arg4: memref<4x32x8xf32, #tpu.memory_space<vmem>>, %arg5: memref<2x16x32xf32, #tpu.memory_space<vmem>>, %arg6: memref<2x4x32xf32, #tpu.memory_space<vmem>>, %arg7: memref<1x1xf32, #tpu.memory_space<vmem>>) attributes {dimension_semantics = [], scalar_prefetch = 0 : i64, scratch_operands = 0 : i64, tpu.core_type = #tpu.core_type<tc>} {
    %c0 = arith.constant 0 : index
    %c0_0 = arith.constant 0 : index
    %c0_1 = arith.constant 0 : index
    %0 = vector.load %arg0[%c0, %c0_0, %c0_1] : memref<2x14x32xf32, #tpu.memory_space<vmem>>, vector<2x14x32xf32>
    %c0_2 = arith.constant 0 : index
    %c0_3 = arith.constant 0 : index
    %1 = vector.load %arg1[%c0_2, %c0_3] : memref<1x32xf32, #tpu.memory_space<vmem>>, vector<1x32xf32>
    %2 = vector.shape_cast %1 : vector<1x32xf32> to vector<1x1x32xf32>
    %c0_4 = arith.constant 0 : index
    %c0_5 = arith.constant 0 : index
    %3 = vector.load %arg2[%c0_4, %c0_5] : memref<1x32xf32, #tpu.memory_space<vmem>>, vector<1x32xf32>
    %4 = vector.shape_cast %3 : vector<1x32xf32> to vector<1x1x32xf32>
    %cst = arith.constant dense<0.000000e+00> : vector<2x14xf32>
    %5 = vector.multi_reduction <add>, %0, %cst [2] : vector<2x14x32xf32> to vector<2x14xf32>
    %6 = vector.shape_cast %5 : vector<2x14xf32> to vector<2x14x1xf32>
    %cst_6 = arith.constant 3.200000e+01 : f32
    %7 = vector.broadcast %cst_6 : f32 to vector<2x14x1xf32>
    %8 = arith.divf %6, %7 : vector<2x14x1xf32>
    %9 = vector.broadcast %8 : vector<2x14x1xf32> to vector<2x14x32xf32>
    %10 = arith.subf %0, %9 : vector<2x14x32xf32>
    %11 = arith.mulf %10, %10 : vector<2x14x32xf32>
    %cst_7 = arith.constant dense<0.000000e+00> : vector<2x14xf32>
    %12 = vector.multi_reduction <add>, %11, %cst_7 [2] : vector<2x14x32xf32> to vector<2x14xf32>
    %13 = vector.shape_cast %12 : vector<2x14xf32> to vector<2x14x1xf32>
    %cst_8 = arith.constant 3.200000e+01 : f32
    %14 = vector.broadcast %cst_8 : f32 to vector<2x14x1xf32>
    %15 = arith.divf %13, %14 : vector<2x14x1xf32>
    %cst_9 = arith.constant 9.99999974E-6 : f32
    %16 = vector.broadcast %cst_9 : f32 to vector<2x14x1xf32>
    %17 = arith.addf %15, %16 : vector<2x14x1xf32>
    %18 = math.rsqrt %17 : vector<2x14x1xf32>
    %19 = vector.broadcast %18 : vector<2x14x1xf32> to vector<2x14x32xf32>
    %20 = arith.mulf %10, %19 : vector<2x14x32xf32>
    %21 = vector.broadcast %2 : vector<1x1x32xf32> to vector<2x14x32xf32>
    %22 = arith.mulf %20, %21 : vector<2x14x32xf32>
    %23 = vector.broadcast %4 : vector<1x1x32xf32> to vector<2x14x32xf32>
    %24 = arith.addf %22, %23 : vector<2x14x32xf32>
    %cst_10 = arith.constant 0.000000e+00 : f32
    %25 = vector.broadcast %cst_10 : f32 to vector<2x2x32xf32>
    %c0_11 = arith.constant 0 : index
    %c0_12 = arith.constant 0 : index
    %c0_13 = arith.constant 0 : index
    %26 = vector.load %arg5[%c0_11, %c0_12, %c0_13] : memref<2x16x32xf32, #tpu.memory_space<vmem>>, vector<2x2x32xf32>
    tpu.vector_store %arg5[%c0_11, %c0_12, %c0_13], %25 {strides = array<i32>} : memref<2x16x32xf32, #tpu.memory_space<vmem>>, vector<2x2x32xf32>,
    %c0_14 = arith.constant 0 : index
    %c2 = arith.constant 2 : index
    %c0_15 = arith.constant 0 : index
    %27 = vector.load %arg5[%c0_14, %c2, %c0_15] : memref<2x16x32xf32, #tpu.memory_space<vmem>>, vector<2x14x32xf32>
    tpu.vector_store %arg5[%c0_14, %c2, %c0_15], %24 {strides = array<i32>} : memref<2x16x32xf32, #tpu.memory_space<vmem>>, vector<2x14x32xf32>,
    %28 = tpu.iota {dimensions = array<i32: 0>} : vector<4x14xi32>
    %29 = tpu.iota {dimensions = array<i32: 1>} : vector<4x14xi32>
    %c2_i32 = arith.constant 2 : i32
    %30 = vector.broadcast %c2_i32 : i32 to vector<4x14xi32>
    %31 = arith.addi %29, %30 : vector<4x14xi32>
    %c4_i32 = arith.constant 4 : i32
    %32 = vector.broadcast %c4_i32 : i32 to vector<4x14xi32>
    %33 = arith.muli %28, %32 : vector<4x14xi32>
    %34 = arith.cmpi sge, %31, %33 : vector<4x14xi32>
    %c1_i32 = arith.constant 1 : i32
    %35 = vector.broadcast %c1_i32 : i32 to vector<4x14xi32>
    %36 = arith.addi %28, %35 : vector<4x14xi32>
    %c4_i32_16 = arith.constant 4 : i32
    %37 = vector.broadcast %c4_i32_16 : i32 to vector<4x14xi32>
    %38 = arith.muli %36, %37 : vector<4x14xi32>
    %39 = arith.cmpi slt, %31, %38 : vector<4x14xi32>
    %40 = arith.andi %34, %39 : vector<4x14xi1>
    %41 = arith.extui %40 : vector<4x14xi1> to vector<4x14xi32>
    %42 = arith.sitofp %41 : vector<4x14xi32> to vector<4x14xf32>
    %cst_17 = arith.constant 2.500000e-01 : f32
    %43 = vector.broadcast %cst_17 : f32 to vector<4x14xf32>
    %44 = arith.mulf %42, %43 : vector<4x14xf32>
    %45 = vector.extract_strided_slice %24 {offsets = [0, 0, 0], sizes = [1, 14, 32], strides = [1, 1, 1]} : vector<2x14x32xf32> to vector<1x14x32xf32>
    %46 = vector.shape_cast %45 : vector<1x14x32xf32> to vector<14x32xf32>
    %cst_18 = arith.constant dense<0.000000e+00> : vector<4x32xf32>
    %47 = tpu.matmul %44, %46, %cst_18 {dimension_numbers = #tpu.dot_dimension_numbers<[1], [0], [0], [1], [0, 0, 1, 1], [], []>} : vector<4x14xf32>, vector<14x32xf32>, vector<4x32xf32> -> vector<4x32xf32>
    %c0_19 = arith.constant 0 : index
    %c0_20 = arith.constant 0 : index
    %c0_21 = arith.constant 0 : index
    %48 = vector.load %arg6[%c0_19, %c0_20, %c0_21] : memref<2x4x32xf32, #tpu.memory_space<vmem>>, vector<1x4x32xf32>
    %49 = vector.shape_cast %48 : vector<1x4x32xf32> to vector<4x32xf32>
    %50 = vector.shape_cast %47 : vector<4x32xf32> to vector<1x4x32xf32>
    tpu.vector_store %arg6[%c0_19, %c0_20, %c0_21], %50 {strides = array<i32>} : memref<2x4x32xf32, #tpu.memory_space<vmem>>, vector<1x4x32xf32>,
    %51 = vector.extract_strided_slice %24 {offsets = [1, 0, 0], sizes = [1, 14, 32], strides = [1, 1, 1]} : vector<2x14x32xf32> to vector<1x14x32xf32>
    %52 = vector.shape_cast %51 : vector<1x14x32xf32> to vector<14x32xf32>
    %cst_22 = arith.constant dense<0.000000e+00> : vector<4x32xf32>
    %53 = tpu.matmul %44, %52, %cst_22 {dimension_numbers = #tpu.dot_dimension_numbers<[1], [0], [0], [1], [0, 0, 1, 1], [], []>} : vector<4x14xf32>, vector<14x32xf32>, vector<4x32xf32> -> vector<4x32xf32>
    %c1 = arith.constant 1 : index
    %c0_23 = arith.constant 0 : index
    %c0_24 = arith.constant 0 : index
    %54 = vector.load %arg6[%c1, %c0_23, %c0_24] : memref<2x4x32xf32, #tpu.memory_space<vmem>>, vector<1x4x32xf32>
    %55 = vector.shape_cast %54 : vector<1x4x32xf32> to vector<4x32xf32>
    %56 = vector.shape_cast %53 : vector<4x32xf32> to vector<1x4x32xf32>
    tpu.vector_store %arg6[%c1, %c0_23, %c0_24], %56 {strides = array<i32>} : memref<2x4x32xf32, #tpu.memory_space<vmem>>, vector<1x4x32xf32>,
    %c0_25 = arith.constant 0 : index
    %c0_26 = arith.constant 0 : index
    %c0_27 = arith.constant 0 : index
    %57 = vector.load %arg3[%c0_25, %c0_26, %c0_27] : memref<4x32x8xf32, #tpu.memory_space<vmem>>, vector<1x32x8xf32>
    %58 = vector.shape_cast %57 : vector<1x32x8xf32> to vector<32x8xf32>
    %cst_28 = arith.constant dense<0.000000e+00> : vector<4x8xf32>
    %59 = tpu.matmul %47, %58, %cst_28 {dimension_numbers = #tpu.dot_dimension_numbers<[1], [0], [0], [1], [0, 0, 1, 1], [], []>} : vector<4x32xf32>, vector<32x8xf32>, vector<4x8xf32> -> vector<4x8xf32>
    %cst_29 = arith.constant 0.353553385 : f32
    %60 = vector.broadcast %cst_29 : f32 to vector<4x8xf32>
    %61 = arith.mulf %59, %60 : vector<4x8xf32>
    %c0_30 = arith.constant 0 : index
    %c0_31 = arith.constant 0 : index
    %c0_32 = arith.constant 0 : index
    %62 = vector.load %arg4[%c0_30, %c0_31, %c0_32] : memref<4x32x8xf32, #tpu.memory_space<vmem>>, vector<1x32x8xf32>
    %63 = vector.shape_cast %62 : vector<1x32x8xf32> to vector<32x8xf32>
    %cst_33 = arith.constant dense<0.000000e+00> : vector<4x8xf32>
    %64 = tpu.matmul %47, %63, %cst_33 {dimension_numbers = #tpu.dot_dimension_numbers<[1], [0], [0], [1], [0, 0, 1, 1], [], []>} : vector<4x32xf32>, vector<32x8xf32>, vector<4x8xf32> -> vector<4x8xf32>
    %cst_34 = arith.constant dense<0.000000e+00> : vector<4x4xf32>
    %65 = tpu.matmul %61, %64, %cst_34 {dimension_numbers = #tpu.dot_dimension_numbers<[1], [1], [0], [0], [0, 0, 1, 0], [], []>} : vector<4x8xf32>, vector<4x8xf32>, vector<4x4xf32> -> vector<4x4xf32>
    %cst_35 = arith.constant dense<0xFF800000> : vector<4xf32>
    %66 = vector.multi_reduction <maximumf>, %65, %cst_35 [1] : vector<4x4xf32> to vector<4xf32>
    %67 = vector.shape_cast %66 : vector<4xf32> to vector<4x1xf32>
    %68 = vector.broadcast %67 : vector<4x1xf32> to vector<4x4xf32>
    %69 = arith.subf %65, %68 : vector<4x4xf32>
    %70 = math.exp %69 : vector<4x4xf32>
    %cst_36 = arith.constant dense<0.000000e+00> : vector<4xf32>
    %71 = vector.multi_reduction <add>, %70, %cst_36 [1] : vector<4x4xf32> to vector<4xf32>
    %72 = vector.shape_cast %71 : vector<4xf32> to vector<4x1xf32>
    %73 = vector.broadcast %72 : vector<4x1xf32> to vector<4x4xf32>
    %74 = arith.divf %70, %73 : vector<4x4xf32>
    %75 = math.absf %74 : vector<4x4xf32>
    %cst_37 = arith.constant dense<0.000000e+00> : vector<4xf32>
    %76 = vector.multi_reduction <add>, %75, %cst_37 [1] : vector<4x4xf32> to vector<4xf32>
    %77 = vector.shape_cast %76 : vector<4xf32> to vector<1x4xf32>
    %cst_38 = arith.constant dense<0xFF800000> : vector<1xf32>
    %78 = vector.multi_reduction <maximumf>, %77, %cst_38 [1] : vector<1x4xf32> to vector<1xf32>
    %79 = vector.shape_cast %78 : vector<1xf32> to vector<1x1xf32>
    %80 = vector.extract %79[0, 0] : f32 from vector<1x1xf32>
    %cst_39 = arith.constant 0xFF800000 : f32
    %81 = arith.maximumf %cst_39, %80 : f32
    %cst_40 = arith.constant dense<0.000000e+00> : vector<4xf32>
    %82 = vector.multi_reduction <add>, %75, %cst_40 [0] : vector<4x4xf32> to vector<4xf32>
    %83 = vector.shape_cast %82 : vector<4xf32> to vector<1x4xf32>
    %cst_41 = arith.constant dense<0xFF800000> : vector<1xf32>
    %84 = vector.multi_reduction <maximumf>, %83, %cst_41 [1] : vector<1x4xf32> to vector<1xf32>
    %85 = vector.shape_cast %84 : vector<1xf32> to vector<1x1xf32>
    %86 = vector.extract %85[0, 0] : f32 from vector<1x1xf32>
    %cst_42 = arith.constant 0xFF800000 : f32
    %87 = arith.maximumf %cst_42, %86 : f32
    %c1_43 = arith.constant 1 : index
    %c0_44 = arith.constant 0 : index
    %c0_45 = arith.constant 0 : index
    %88 = vector.load %arg3[%c1_43, %c0_44, %c0_45] : memref<4x32x8xf32, #tpu.memory_space<vmem>>, vector<1x32x8xf32>
    %89 = vector.shape_cast %88 : vector<1x32x8xf32> to vector<32x8xf32>
    %cst_46 = arith.constant dense<0.000000e+00> : vector<4x8xf32>
    %90 = tpu.matmul %47, %89, %cst_46 {dimension_numbers = #tpu.dot_dimension_numbers<[1], [0], [0], [1], [0, 0, 1, 1], [], []>} : vector<4x32xf32>, vector<32x8xf32>, vector<4x8xf32> -> vector<4x8xf32>
    %cst_47 = arith.constant 0.353553385 : f32
    %91 = vector.broadcast %cst_47 : f32 to vector<4x8xf32>
    %92 = arith.mulf %90, %91 : vector<4x8xf32>
    %c1_48 = arith.constant 1 : index
    %c0_49 = arith.constant 0 : index
    %c0_50 = arith.constant 0 : index
    %93 = vector.load %arg4[%c1_48, %c0_49, %c0_50] : memref<4x32x8xf32, #tpu.memory_space<vmem>>, vector<1x32x8xf32>
    %94 = vector.shape_cast %93 : vector<1x32x8xf32> to vector<32x8xf32>
    %cst_51 = arith.constant dense<0.000000e+00> : vector<4x8xf32>
    %95 = tpu.matmul %47, %94, %cst_51 {dimension_numbers = #tpu.dot_dimension_numbers<[1], [0], [0], [1], [0, 0, 1, 1], [], []>} : vector<4x32xf32>, vector<32x8xf32>, vector<4x8xf32> -> vector<4x8xf32>
    %cst_52 = arith.constant dense<0.000000e+00> : vector<4x4xf32>
    %96 = tpu.matmul %92, %95, %cst_52 {dimension_numbers = #tpu.dot_dimension_numbers<[1], [1], [0], [0], [0, 0, 1, 0], [], []>} : vector<4x8xf32>, vector<4x8xf32>, vector<4x4xf32> -> vector<4x4xf32>
    %cst_53 = arith.constant dense<0xFF800000> : vector<4xf32>
    %97 = vector.multi_reduction <maximumf>, %96, %cst_53 [1] : vector<4x4xf32> to vector<4xf32>
    %98 = vector.shape_cast %97 : vector<4xf32> to vector<4x1xf32>
    %99 = vector.broadcast %98 : vector<4x1xf32> to vector<4x4xf32>
    %100 = arith.subf %96, %99 : vector<4x4xf32>
    %101 = math.exp %100 : vector<4x4xf32>
    %cst_54 = arith.constant dense<0.000000e+00> : vector<4xf32>
    %102 = vector.multi_reduction <add>, %101, %cst_54 [1] : vector<4x4xf32> to vector<4xf32>
    %103 = vector.shape_cast %102 : vector<4xf32> to vector<4x1xf32>
    %104 = vector.broadcast %103 : vector<4x1xf32> to vector<4x4xf32>
    %105 = arith.divf %101, %104 : vector<4x4xf32>
    %106 = math.absf %105 : vector<4x4xf32>
    %cst_55 = arith.constant dense<0.000000e+00> : vector<4xf32>
    %107 = vector.multi_reduction <add>, %106, %cst_55 [1] : vector<4x4xf32> to vector<4xf32>
    %108 = vector.shape_cast %107 : vector<4xf32> to vector<1x4xf32>
    %cst_56 = arith.constant dense<0xFF800000> : vector<1xf32>
    %109 = vector.multi_reduction <maximumf>, %108, %cst_56 [1] : vector<1x4xf32> to vector<1xf32>
    %110 = vector.shape_cast %109 : vector<1xf32> to vector<1x1xf32>
    %111 = vector.extract %110[0, 0] : f32 from vector<1x1xf32>
    %112 = arith.maximumf %81, %111 : f32
    %cst_57 = arith.constant dense<0.000000e+00> : vector<4xf32>
    %113 = vector.multi_reduction <add>, %106, %cst_57 [0] : vector<4x4xf32> to vector<4xf32>
    %114 = vector.shape_cast %113 : vector<4xf32> to vector<1x4xf32>
    %cst_58 = arith.constant dense<0xFF800000> : vector<1xf32>
    %115 = vector.multi_reduction <maximumf>, %114, %cst_58 [1] : vector<1x4xf32> to vector<1xf32>
    %116 = vector.shape_cast %115 : vector<1xf32> to vector<1x1xf32>
    %117 = vector.extract %116[0, 0] : f32 from vector<1x1xf32>
    %118 = arith.maximumf %87, %117 : f32
    %c2_59 = arith.constant 2 : index
    %c0_60 = arith.constant 0 : index
    %c0_61 = arith.constant 0 : index
    %119 = vector.load %arg3[%c2_59, %c0_60, %c0_61] : memref<4x32x8xf32, #tpu.memory_space<vmem>>, vector<1x32x8xf32>
    %120 = vector.shape_cast %119 : vector<1x32x8xf32> to vector<32x8xf32>
    %cst_62 = arith.constant dense<0.000000e+00> : vector<4x8xf32>
    %121 = tpu.matmul %47, %120, %cst_62 {dimension_numbers = #tpu.dot_dimension_numbers<[1], [0], [0], [1], [0, 0, 1, 1], [], []>} : vector<4x32xf32>, vector<32x8xf32>, vector<4x8xf32> -> vector<4x8xf32>
    %cst_63 = arith.constant 0.353553385 : f32
    %122 = vector.broadcast %cst_63 : f32 to vector<4x8xf32>
    %123 = arith.mulf %121, %122 : vector<4x8xf32>
    %c2_64 = arith.constant 2 : index
    %c0_65 = arith.constant 0 : index
    %c0_66 = arith.constant 0 : index
    %124 = vector.load %arg4[%c2_64, %c0_65, %c0_66] : memref<4x32x8xf32, #tpu.memory_space<vmem>>, vector<1x32x8xf32>
    %125 = vector.shape_cast %124 : vector<1x32x8xf32> to vector<32x8xf32>
    %cst_67 = arith.constant dense<0.000000e+00> : vector<4x8xf32>
    %126 = tpu.matmul %47, %125, %cst_67 {dimension_numbers = #tpu.dot_dimension_numbers<[1], [0], [0], [1], [0, 0, 1, 1], [], []>} : vector<4x32xf32>, vector<32x8xf32>, vector<4x8xf32> -> vector<4x8xf32>
    %cst_68 = arith.constant dense<0.000000e+00> : vector<4x4xf32>
    %127 = tpu.matmul %123, %126, %cst_68 {dimension_numbers = #tpu.dot_dimension_numbers<[1], [1], [0], [0], [0, 0, 1, 0], [], []>} : vector<4x8xf32>, vector<4x8xf32>, vector<4x4xf32> -> vector<4x4xf32>
    %cst_69 = arith.constant dense<0xFF800000> : vector<4xf32>
    %128 = vector.multi_reduction <maximumf>, %127, %cst_69 [1] : vector<4x4xf32> to vector<4xf32>
    %129 = vector.shape_cast %128 : vector<4xf32> to vector<4x1xf32>
    %130 = vector.broadcast %129 : vector<4x1xf32> to vector<4x4xf32>
    %131 = arith.subf %127, %130 : vector<4x4xf32>
    %132 = math.exp %131 : vector<4x4xf32>
    %cst_70 = arith.constant dense<0.000000e+00> : vector<4xf32>
    %133 = vector.multi_reduction <add>, %132, %cst_70 [1] : vector<4x4xf32> to vector<4xf32>
    %134 = vector.shape_cast %133 : vector<4xf32> to vector<4x1xf32>
    %135 = vector.broadcast %134 : vector<4x1xf32> to vector<4x4xf32>
    %136 = arith.divf %132, %135 : vector<4x4xf32>
    %137 = math.absf %136 : vector<4x4xf32>
    %cst_71 = arith.constant dense<0.000000e+00> : vector<4xf32>
    %138 = vector.multi_reduction <add>, %137, %cst_71 [1] : vector<4x4xf32> to vector<4xf32>
    %139 = vector.shape_cast %138 : vector<4xf32> to vector<1x4xf32>
    %cst_72 = arith.constant dense<0xFF800000> : vector<1xf32>
    %140 = vector.multi_reduction <maximumf>, %139, %cst_72 [1] : vector<1x4xf32> to vector<1xf32>
    %141 = vector.shape_cast %140 : vector<1xf32> to vector<1x1xf32>
    %142 = vector.extract %141[0, 0] : f32 from vector<1x1xf32>
    %143 = arith.maximumf %112, %142 : f32
    %cst_73 = arith.constant dense<0.000000e+00> : vector<4xf32>
    %144 = vector.multi_reduction <add>, %137, %cst_73 [0] : vector<4x4xf32> to vector<4xf32>
    %145 = vector.shape_cast %144 : vector<4xf32> to vector<1x4xf32>
    %cst_74 = arith.constant dense<0xFF800000> : vector<1xf32>
    %146 = vector.multi_reduction <maximumf>, %145, %cst_74 [1] : vector<1x4xf32> to vector<1xf32>
    %147 = vector.shape_cast %146 : vector<1xf32> to vector<1x1xf32>
    %148 = vector.extract %147[0, 0] : f32 from vector<1x1xf32>
    %149 = arith.maximumf %118, %148 : f32
    %c3 = arith.constant 3 : index
    %c0_75 = arith.constant 0 : index
    %c0_76 = arith.constant 0 : index
    %150 = vector.load %arg3[%c3, %c0_75, %c0_76] : memref<4x32x8xf32, #tpu.memory_space<vmem>>, vector<1x32x8xf32>
    %151 = vector.shape_cast %150 : vector<1x32x8xf32> to vector<32x8xf32>
    %cst_77 = arith.constant dense<0.000000e+00> : vector<4x8xf32>
    %152 = tpu.matmul %47, %151, %cst_77 {dimension_numbers = #tpu.dot_dimension_numbers<[1], [0], [0], [1], [0, 0, 1, 1], [], []>} : vector<4x32xf32>, vector<32x8xf32>, vector<4x8xf32> -> vector<4x8xf32>
    %cst_78 = arith.constant 0.353553385 : f32
    %153 = vector.broadcast %cst_78 : f32 to vector<4x8xf32>
    %154 = arith.mulf %152, %153 : vector<4x8xf32>
    %c3_79 = arith.constant 3 : index
    %c0_80 = arith.constant 0 : index
    %c0_81 = arith.constant 0 : index
    %155 = vector.load %arg4[%c3_79, %c0_80, %c0_81] : memref<4x32x8xf32, #tpu.memory_space<vmem>>, vector<1x32x8xf32>
    %156 = vector.shape_cast %155 : vector<1x32x8xf32> to vector<32x8xf32>
    %cst_82 = arith.constant dense<0.000000e+00> : vector<4x8xf32>
    %157 = tpu.matmul %47, %156, %cst_82 {dimension_numbers = #tpu.dot_dimension_numbers<[1], [0], [0], [1], [0, 0, 1, 1], [], []>} : vector<4x32xf32>, vector<32x8xf32>, vector<4x8xf32> -> vector<4x8xf32>
    %cst_83 = arith.constant dense<0.000000e+00> : vector<4x4xf32>
    %158 = tpu.matmul %154, %157, %cst_83 {dimension_numbers = #tpu.dot_dimension_numbers<[1], [1], [0], [0], [0, 0, 1, 0], [], []>} : vector<4x8xf32>, vector<4x8xf32>, vector<4x4xf32> -> vector<4x4xf32>
    %cst_84 = arith.constant dense<0xFF800000> : vector<4xf32>
    %159 = vector.multi_reduction <maximumf>, %158, %cst_84 [1] : vector<4x4xf32> to vector<4xf32>
    %160 = vector.shape_cast %159 : vector<4xf32> to vector<4x1xf32>
    %161 = vector.broadcast %160 : vector<4x1xf32> to vector<4x4xf32>
    %162 = arith.subf %158, %161 : vector<4x4xf32>
    %163 = math.exp %162 : vector<4x4xf32>
    %cst_85 = arith.constant dense<0.000000e+00> : vector<4xf32>
    %164 = vector.multi_reduction <add>, %163, %cst_85 [1] : vector<4x4xf32> to vector<4xf32>
    %165 = vector.shape_cast %164 : vector<4xf32> to vector<4x1xf32>
    %166 = vector.broadcast %165 : vector<4x1xf32> to vector<4x4xf32>
    %167 = arith.divf %163, %166 : vector<4x4xf32>
    %168 = math.absf %167 : vector<4x4xf32>
    %cst_86 = arith.constant dense<0.000000e+00> : vector<4xf32>
    %169 = vector.multi_reduction <add>, %168, %cst_86 [1] : vector<4x4xf32> to vector<4xf32>
    %170 = vector.shape_cast %169 : vector<4xf32> to vector<1x4xf32>
    %cst_87 = arith.constant dense<0xFF800000> : vector<1xf32>
    %171 = vector.multi_reduction <maximumf>, %170, %cst_87 [1] : vector<1x4xf32> to vector<1xf32>
    %172 = vector.shape_cast %171 : vector<1xf32> to vector<1x1xf32>
    %173 = vector.extract %172[0, 0] : f32 from vector<1x1xf32>
    %174 = arith.maximumf %143, %173 : f32
    %cst_88 = arith.constant dense<0.000000e+00> : vector<4xf32>
    %175 = vector.multi_reduction <add>, %168, %cst_88 [0] : vector<4x4xf32> to vector<4xf32>
    %176 = vector.shape_cast %175 : vector<4xf32> to vector<1x4xf32>
    %cst_89 = arith.constant dense<0xFF800000> : vector<1xf32>
    %177 = vector.multi_reduction <maximumf>, %176, %cst_89 [1] : vector<1x4xf32> to vector<1xf32>
    %178 = vector.shape_cast %177 : vector<1xf32> to vector<1x1xf32>
    %179 = vector.extract %178[0, 0] : f32 from vector<1x1xf32>
    %180 = arith.maximumf %149, %179 : f32
    %c0_90 = arith.constant 0 : index
    %c0_91 = arith.constant 0 : index
    %c0_92 = arith.constant 0 : index
    %181 = vector.load %arg3[%c0_90, %c0_91, %c0_92] : memref<4x32x8xf32, #tpu.memory_space<vmem>>, vector<1x32x8xf32>
    %182 = vector.shape_cast %181 : vector<1x32x8xf32> to vector<32x8xf32>
    %cst_93 = arith.constant dense<0.000000e+00> : vector<4x8xf32>
    %183 = tpu.matmul %53, %182, %cst_93 {dimension_numbers = #tpu.dot_dimension_numbers<[1], [0], [0], [1], [0, 0, 1, 1], [], []>} : vector<4x32xf32>, vector<32x8xf32>, vector<4x8xf32> -> vector<4x8xf32>
    %cst_94 = arith.constant 0.353553385 : f32
    %184 = vector.broadcast %cst_94 : f32 to vector<4x8xf32>
    %185 = arith.mulf %183, %184 : vector<4x8xf32>
    %c0_95 = arith.constant 0 : index
    %c0_96 = arith.constant 0 : index
    %c0_97 = arith.constant 0 : index
    %186 = vector.load %arg4[%c0_95, %c0_96, %c0_97] : memref<4x32x8xf32, #tpu.memory_space<vmem>>, vector<1x32x8xf32>
    %187 = vector.shape_cast %186 : vector<1x32x8xf32> to vector<32x8xf32>
    %cst_98 = arith.constant dense<0.000000e+00> : vector<4x8xf32>
    %188 = tpu.matmul %53, %187, %cst_98 {dimension_numbers = #tpu.dot_dimension_numbers<[1], [0], [0], [1], [0, 0, 1, 1], [], []>} : vector<4x32xf32>, vector<32x8xf32>, vector<4x8xf32> -> vector<4x8xf32>
    %cst_99 = arith.constant dense<0.000000e+00> : vector<4x4xf32>
    %189 = tpu.matmul %185, %188, %cst_99 {dimension_numbers = #tpu.dot_dimension_numbers<[1], [1], [0], [0], [0, 0, 1, 0], [], []>} : vector<4x8xf32>, vector<4x8xf32>, vector<4x4xf32> -> vector<4x4xf32>
    %cst_100 = arith.constant dense<0xFF800000> : vector<4xf32>
    %190 = vector.multi_reduction <maximumf>, %189, %cst_100 [1] : vector<4x4xf32> to vector<4xf32>
    %191 = vector.shape_cast %190 : vector<4xf32> to vector<4x1xf32>
    %192 = vector.broadcast %191 : vector<4x1xf32> to vector<4x4xf32>
    %193 = arith.subf %189, %192 : vector<4x4xf32>
    %194 = math.exp %193 : vector<4x4xf32>
    %cst_101 = arith.constant dense<0.000000e+00> : vector<4xf32>
    %195 = vector.multi_reduction <add>, %194, %cst_101 [1] : vector<4x4xf32> to vector<4xf32>
    %196 = vector.shape_cast %195 : vector<4xf32> to vector<4x1xf32>
    %197 = vector.broadcast %196 : vector<4x1xf32> to vector<4x4xf32>
    %198 = arith.divf %194, %197 : vector<4x4xf32>
    %199 = math.absf %198 : vector<4x4xf32>
    %cst_102 = arith.constant dense<0.000000e+00> : vector<4xf32>
    %200 = vector.multi_reduction <add>, %199, %cst_102 [1] : vector<4x4xf32> to vector<4xf32>
    %201 = vector.shape_cast %200 : vector<4xf32> to vector<1x4xf32>
    %cst_103 = arith.constant dense<0xFF800000> : vector<1xf32>
    %202 = vector.multi_reduction <maximumf>, %201, %cst_103 [1] : vector<1x4xf32> to vector<1xf32>
    %203 = vector.shape_cast %202 : vector<1xf32> to vector<1x1xf32>
    %204 = vector.extract %203[0, 0] : f32 from vector<1x1xf32>
    %205 = arith.maximumf %174, %204 : f32
    %cst_104 = arith.constant dense<0.000000e+00> : vector<4xf32>
    %206 = vector.multi_reduction <add>, %199, %cst_104 [0] : vector<4x4xf32> to vector<4xf32>
    %207 = vector.shape_cast %206 : vector<4xf32> to vector<1x4xf32>
    %cst_105 = arith.constant dense<0xFF800000> : vector<1xf32>
    %208 = vector.multi_reduction <maximumf>, %207, %cst_105 [1] : vector<1x4xf32> to vector<1xf32>
    %209 = vector.shape_cast %208 : vector<1xf32> to vector<1x1xf32>
    %210 = vector.extract %209[0, 0] : f32 from vector<1x1xf32>
    %211 = arith.maximumf %180, %210 : f32
    %c1_106 = arith.constant 1 : index
    %c0_107 = arith.constant 0 : index
    %c0_108 = arith.constant 0 : index
    %212 = vector.load %arg3[%c1_106, %c0_107, %c0_108] : memref<4x32x8xf32, #tpu.memory_space<vmem>>, vector<1x32x8xf32>
    %213 = vector.shape_cast %212 : vector<1x32x8xf32> to vector<32x8xf32>
    %cst_109 = arith.constant dense<0.000000e+00> : vector<4x8xf32>
    %214 = tpu.matmul %53, %213, %cst_109 {dimension_numbers = #tpu.dot_dimension_numbers<[1], [0], [0], [1], [0, 0, 1, 1], [], []>} : vector<4x32xf32>, vector<32x8xf32>, vector<4x8xf32> -> vector<4x8xf32>
    %cst_110 = arith.constant 0.353553385 : f32
    %215 = vector.broadcast %cst_110 : f32 to vector<4x8xf32>
    %216 = arith.mulf %214, %215 : vector<4x8xf32>
    %c1_111 = arith.constant 1 : index
    %c0_112 = arith.constant 0 : index
    %c0_113 = arith.constant 0 : index
    %217 = vector.load %arg4[%c1_111, %c0_112, %c0_113] : memref<4x32x8xf32, #tpu.memory_space<vmem>>, vector<1x32x8xf32>
    %218 = vector.shape_cast %217 : vector<1x32x8xf32> to vector<32x8xf32>
    %cst_114 = arith.constant dense<0.000000e+00> : vector<4x8xf32>
    %219 = tpu.matmul %53, %218, %cst_114 {dimension_numbers = #tpu.dot_dimension_numbers<[1], [0], [0], [1], [0, 0, 1, 1], [], []>} : vector<4x32xf32>, vector<32x8xf32>, vector<4x8xf32> -> vector<4x8xf32>
    %cst_115 = arith.constant dense<0.000000e+00> : vector<4x4xf32>
    %220 = tpu.matmul %216, %219, %cst_115 {dimension_numbers = #tpu.dot_dimension_numbers<[1], [1], [0], [0], [0, 0, 1, 0], [], []>} : vector<4x8xf32>, vector<4x8xf32>, vector<4x4xf32> -> vector<4x4xf32>
    %cst_116 = arith.constant dense<0xFF800000> : vector<4xf32>
    %221 = vector.multi_reduction <maximumf>, %220, %cst_116 [1] : vector<4x4xf32> to vector<4xf32>
    %222 = vector.shape_cast %221 : vector<4xf32> to vector<4x1xf32>
    %223 = vector.broadcast %222 : vector<4x1xf32> to vector<4x4xf32>
    %224 = arith.subf %220, %223 : vector<4x4xf32>
    %225 = math.exp %224 : vector<4x4xf32>
    %cst_117 = arith.constant dense<0.000000e+00> : vector<4xf32>
    %226 = vector.multi_reduction <add>, %225, %cst_117 [1] : vector<4x4xf32> to vector<4xf32>
    %227 = vector.shape_cast %226 : vector<4xf32> to vector<4x1xf32>
    %228 = vector.broadcast %227 : vector<4x1xf32> to vector<4x4xf32>
    %229 = arith.divf %225, %228 : vector<4x4xf32>
    %230 = math.absf %229 : vector<4x4xf32>
    %cst_118 = arith.constant dense<0.000000e+00> : vector<4xf32>
    %231 = vector.multi_reduction <add>, %230, %cst_118 [1] : vector<4x4xf32> to vector<4xf32>
    %232 = vector.shape_cast %231 : vector<4xf32> to vector<1x4xf32>
    %cst_119 = arith.constant dense<0xFF800000> : vector<1xf32>
    %233 = vector.multi_reduction <maximumf>, %232, %cst_119 [1] : vector<1x4xf32> to vector<1xf32>
    %234 = vector.shape_cast %233 : vector<1xf32> to vector<1x1xf32>
    %235 = vector.extract %234[0, 0] : f32 from vector<1x1xf32>
    %236 = arith.maximumf %205, %235 : f32
    %cst_120 = arith.constant dense<0.000000e+00> : vector<4xf32>
    %237 = vector.multi_reduction <add>, %230, %cst_120 [0] : vector<4x4xf32> to vector<4xf32>
    %238 = vector.shape_cast %237 : vector<4xf32> to vector<1x4xf32>
    %cst_121 = arith.constant dense<0xFF800000> : vector<1xf32>
    %239 = vector.multi_reduction <maximumf>, %238, %cst_121 [1] : vector<1x4xf32> to vector<1xf32>
    %240 = vector.shape_cast %239 : vector<1xf32> to vector<1x1xf32>
    %241 = vector.extract %240[0, 0] : f32 from vector<1x1xf32>
    %242 = arith.maximumf %211, %241 : f32
    %c2_122 = arith.constant 2 : index
    %c0_123 = arith.constant 0 : index
    %c0_124 = arith.constant 0 : index
    %243 = vector.load %arg3[%c2_122, %c0_123, %c0_124] : memref<4x32x8xf32, #tpu.memory_space<vmem>>, vector<1x32x8xf32>
    %244 = vector.shape_cast %243 : vector<1x32x8xf32> to vector<32x8xf32>
    %cst_125 = arith.constant dense<0.000000e+00> : vector<4x8xf32>
    %245 = tpu.matmul %53, %244, %cst_125 {dimension_numbers = #tpu.dot_dimension_numbers<[1], [0], [0], [1], [0, 0, 1, 1], [], []>} : vector<4x32xf32>, vector<32x8xf32>, vector<4x8xf32> -> vector<4x8xf32>
    %cst_126 = arith.constant 0.353553385 : f32
    %246 = vector.broadcast %cst_126 : f32 to vector<4x8xf32>
    %247 = arith.mulf %245, %246 : vector<4x8xf32>
    %c2_127 = arith.constant 2 : index
    %c0_128 = arith.constant 0 : index
    %c0_129 = arith.constant 0 : index
    %248 = vector.load %arg4[%c2_127, %c0_128, %c0_129] : memref<4x32x8xf32, #tpu.memory_space<vmem>>, vector<1x32x8xf32>
    %249 = vector.shape_cast %248 : vector<1x32x8xf32> to vector<32x8xf32>
    %cst_130 = arith.constant dense<0.000000e+00> : vector<4x8xf32>
    %250 = tpu.matmul %53, %249, %cst_130 {dimension_numbers = #tpu.dot_dimension_numbers<[1], [0], [0], [1], [0, 0, 1, 1], [], []>} : vector<4x32xf32>, vector<32x8xf32>, vector<4x8xf32> -> vector<4x8xf32>
    %cst_131 = arith.constant dense<0.000000e+00> : vector<4x4xf32>
    %251 = tpu.matmul %247, %250, %cst_131 {dimension_numbers = #tpu.dot_dimension_numbers<[1], [1], [0], [0], [0, 0, 1, 0], [], []>} : vector<4x8xf32>, vector<4x8xf32>, vector<4x4xf32> -> vector<4x4xf32>
    %cst_132 = arith.constant dense<0xFF800000> : vector<4xf32>
    %252 = vector.multi_reduction <maximumf>, %251, %cst_132 [1] : vector<4x4xf32> to vector<4xf32>
    %253 = vector.shape_cast %252 : vector<4xf32> to vector<4x1xf32>
    %254 = vector.broadcast %253 : vector<4x1xf32> to vector<4x4xf32>
    %255 = arith.subf %251, %254 : vector<4x4xf32>
    %256 = math.exp %255 : vector<4x4xf32>
    %cst_133 = arith.constant dense<0.000000e+00> : vector<4xf32>
    %257 = vector.multi_reduction <add>, %256, %cst_133 [1] : vector<4x4xf32> to vector<4xf32>
    %258 = vector.shape_cast %257 : vector<4xf32> to vector<4x1xf32>
    %259 = vector.broadcast %258 : vector<4x1xf32> to vector<4x4xf32>
    %260 = arith.divf %256, %259 : vector<4x4xf32>
    %261 = math.absf %260 : vector<4x4xf32>
    %cst_134 = arith.constant dense<0.000000e+00> : vector<4xf32>
    %262 = vector.multi_reduction <add>, %261, %cst_134 [1] : vector<4x4xf32> to vector<4xf32>
    %263 = vector.shape_cast %262 : vector<4xf32> to vector<1x4xf32>
    %cst_135 = arith.constant dense<0xFF800000> : vector<1xf32>
    %264 = vector.multi_reduction <maximumf>, %263, %cst_135 [1] : vector<1x4xf32> to vector<1xf32>
    %265 = vector.shape_cast %264 : vector<1xf32> to vector<1x1xf32>
    %266 = vector.extract %265[0, 0] : f32 from vector<1x1xf32>
    %267 = arith.maximumf %236, %266 : f32
    %cst_136 = arith.constant dense<0.000000e+00> : vector<4xf32>
    %268 = vector.multi_reduction <add>, %261, %cst_136 [0] : vector<4x4xf32> to vector<4xf32>
    %269 = vector.shape_cast %268 : vector<4xf32> to vector<1x4xf32>
    %cst_137 = arith.constant dense<0xFF800000> : vector<1xf32>
    %270 = vector.multi_reduction <maximumf>, %269, %cst_137 [1] : vector<1x4xf32> to vector<1xf32>
    %271 = vector.shape_cast %270 : vector<1xf32> to vector<1x1xf32>
    %272 = vector.extract %271[0, 0] : f32 from vector<1x1xf32>
    %273 = arith.maximumf %242, %272 : f32
    %c3_138 = arith.constant 3 : index
    %c0_139 = arith.constant 0 : index
    %c0_140 = arith.constant 0 : index
    %274 = vector.load %arg3[%c3_138, %c0_139, %c0_140] : memref<4x32x8xf32, #tpu.memory_space<vmem>>, vector<1x32x8xf32>
    %275 = vector.shape_cast %274 : vector<1x32x8xf32> to vector<32x8xf32>
    %cst_141 = arith.constant dense<0.000000e+00> : vector<4x8xf32>
    %276 = tpu.matmul %53, %275, %cst_141 {dimension_numbers = #tpu.dot_dimension_numbers<[1], [0], [0], [1], [0, 0, 1, 1], [], []>} : vector<4x32xf32>, vector<32x8xf32>, vector<4x8xf32> -> vector<4x8xf32>
    %cst_142 = arith.constant 0.353553385 : f32
    %277 = vector.broadcast %cst_142 : f32 to vector<4x8xf32>
    %278 = arith.mulf %276, %277 : vector<4x8xf32>
    %c3_143 = arith.constant 3 : index
    %c0_144 = arith.constant 0 : index
    %c0_145 = arith.constant 0 : index
    %279 = vector.load %arg4[%c3_143, %c0_144, %c0_145] : memref<4x32x8xf32, #tpu.memory_space<vmem>>, vector<1x32x8xf32>
    %280 = vector.shape_cast %279 : vector<1x32x8xf32> to vector<32x8xf32>
    %cst_146 = arith.constant dense<0.000000e+00> : vector<4x8xf32>
    %281 = tpu.matmul %53, %280, %cst_146 {dimension_numbers = #tpu.dot_dimension_numbers<[1], [0], [0], [1], [0, 0, 1, 1], [], []>} : vector<4x32xf32>, vector<32x8xf32>, vector<4x8xf32> -> vector<4x8xf32>
    %cst_147 = arith.constant dense<0.000000e+00> : vector<4x4xf32>
    %282 = tpu.matmul %278, %281, %cst_147 {dimension_numbers = #tpu.dot_dimension_numbers<[1], [1], [0], [0], [0, 0, 1, 0], [], []>} : vector<4x8xf32>, vector<4x8xf32>, vector<4x4xf32> -> vector<4x4xf32>
    %cst_148 = arith.constant dense<0xFF800000> : vector<4xf32>
    %283 = vector.multi_reduction <maximumf>, %282, %cst_148 [1] : vector<4x4xf32> to vector<4xf32>
    %284 = vector.shape_cast %283 : vector<4xf32> to vector<4x1xf32>
    %285 = vector.broadcast %284 : vector<4x1xf32> to vector<4x4xf32>
    %286 = arith.subf %282, %285 : vector<4x4xf32>
    %287 = math.exp %286 : vector<4x4xf32>
    %cst_149 = arith.constant dense<0.000000e+00> : vector<4xf32>
    %288 = vector.multi_reduction <add>, %287, %cst_149 [1] : vector<4x4xf32> to vector<4xf32>
    %289 = vector.shape_cast %288 : vector<4xf32> to vector<4x1xf32>
    %290 = vector.broadcast %289 : vector<4x1xf32> to vector<4x4xf32>
    %291 = arith.divf %287, %290 : vector<4x4xf32>
    %292 = math.absf %291 : vector<4x4xf32>
    %cst_150 = arith.constant dense<0.000000e+00> : vector<4xf32>
    %293 = vector.multi_reduction <add>, %292, %cst_150 [1] : vector<4x4xf32> to vector<4xf32>
    %294 = vector.shape_cast %293 : vector<4xf32> to vector<1x4xf32>
    %cst_151 = arith.constant dense<0xFF800000> : vector<1xf32>
    %295 = vector.multi_reduction <maximumf>, %294, %cst_151 [1] : vector<1x4xf32> to vector<1xf32>
    %296 = vector.shape_cast %295 : vector<1xf32> to vector<1x1xf32>
    %297 = vector.extract %296[0, 0] : f32 from vector<1x1xf32>
    %298 = arith.maximumf %267, %297 : f32
    %cst_152 = arith.constant dense<0.000000e+00> : vector<4xf32>
    %299 = vector.multi_reduction <add>, %292, %cst_152 [0] : vector<4x4xf32> to vector<4xf32>
    %300 = vector.shape_cast %299 : vector<4xf32> to vector<1x4xf32>
    %cst_153 = arith.constant dense<0xFF800000> : vector<1xf32>
    %301 = vector.multi_reduction <maximumf>, %300, %cst_153 [1] : vector<1x4xf32> to vector<1xf32>
    %302 = vector.shape_cast %301 : vector<1xf32> to vector<1x1xf32>
    %303 = vector.extract %302[0, 0] : f32 from vector<1x1xf32>
    %304 = arith.maximumf %273, %303 : f32
    %305 = arith.mulf %298, %304 : f32
    %306 = vector.broadcast %305 : f32 to vector<1x1xf32>
    %c0_154 = arith.constant 0 : index
    %c0_155 = arith.constant 0 : index
    %307 = vector.load %arg7[%c0_154, %c0_155] : memref<1x1xf32, #tpu.memory_space<vmem>>, vector<1x1xf32>
    tpu.vector_store %arg7[%c0_154, %c0_155], %306 {strides = array<i32>} : memref<1x1xf32, #tpu.memory_space<vmem>>, vector<1x1xf32>,
    return
  }
}

</mosaic_0001>

<llo_original>
// kernel: tpu_custom_call.1
$region0: #{tpu_custom_call.1}
  #allocation0 [shape = 'u32[]', space=smem, size = 0x4, offset = 0x4, fixed_abs, tag = 'smem constant byte address 0x4 - core index']
  #allocation1 [shape = 'u32[72,128]{1,0:T(1,128)}', space=vmem, size = 0x9000, scoped, tag = 'internal scratch']
  %s0 = inlined_call_operand.vmem [shape: f32[2,14,32], index: 0, kind: input, shape index: {}]
  %s1 = inlined_call_operand.vmem [shape: f32[1,32], index: 1, kind: input, shape index: {}]
  %s2 = inlined_call_operand.vmem [shape: f32[1,32], index: 2, kind: input, shape index: {}]
  %s3 = inlined_call_operand.vmem [shape: f32[4,32,8], index: 3, kind: input, shape index: {}]
  %s4 = inlined_call_operand.vmem [shape: f32[4,32,8], index: 4, kind: input, shape index: {}]
  %s5 = inlined_call_operand.hbm [shape: f32[2,16,32], index: 5, kind: output, shape index: {0}]
  %s6 = inlined_call_operand.hbm [shape: f32[2,4,32], index: 6, kind: output, shape index: {1}]
  %s7 = inlined_call_operand.hbm [shape: f32[1,1], index: 7, kind: output, shape index: {2}]
  %8 = xla_tuple %s5, %s6, %s7
  %s9 = sld [smem:[#allocation0]]
  $region46: #{tpu_custom_call.1} parent=0
    _
  %s11 = ssub.s32 1, %s9
  %s12 = scalar_select 0, %s11, %s9
  $region1: #{tpu_custom_call.1} parent=0
    #allocation2 [shape = 'u8[16384]{0}', space=vmem, size = 0x4000, scoped, tag = 'output window, operand 0, single buffered']
    #allocation3 [shape = 's32[1]{0}', space=sflag, size = 0x4, scoped, tag = 'scoped memory for tpu_custom_call.1']
    #allocation4 [shape = 'u8[4096]{0}', space=vmem, size = 0x1000, scoped, tag = 'output window, operand 1, single buffered']
    #allocation5 [shape = 's32[1]{0}', space=sflag, size = 0x4, scoped, tag = 'scoped memory for tpu_custom_call.1']
    #allocation6 [shape = 'u8[512]{0}', space=vmem, size = 0x400, scoped, tag = 'output window, operand 2, single buffered']
    %13 = vsyncpa [#allocation3], 0
    %14 = vsyncpa [#allocation5], 0
    // Predicated region
    $region2: #{tpu_custom_call.1} parent=1 // pred_check
      _
    $region3: #{tpu_custom_call.1} parent=1 // pred_check_branch
      %16 = sbr.rel (0) target = $region5
    $region4: #{tpu_custom_call.1} parent=1 // pred_region
      _
    $region5: #{tpu_custom_call.1} parent=1 // pred_fallthru
      _
    // Predicated region
    $region6: #{tpu_custom_call.1} parent=1 // pred_check
      _
    $region7: #{tpu_custom_call.1} parent=1 // pred_check_branch
      %18 = sbr.rel (0) target = $region9
    $region8: #{tpu_custom_call.1} parent=1 // pred_region
      _
    $region9: #{tpu_custom_call.1} parent=1 // pred_fallthru
      _
    // Predicated region
    $region10: #{tpu_custom_call.1} parent=1 // pred_check
      _
    $region11: #{tpu_custom_call.1} parent=1 // pred_check_branch
      %20 = sbr.rel (0) target = $region13
    $region12: #{tpu_custom_call.1} parent=1 // pred_region
      _
    $region13: #{tpu_custom_call.1} parent=1 // pred_fallthru
      _
    // Predicated region
    $region14: #{tpu_custom_call.1} parent=1 // pred_check
      _
    $region15: #{tpu_custom_call.1} parent=1 // pred_check_branch
      %22 = sbr.rel (0) target = $region17
    $region16: #{tpu_custom_call.1} parent=1 // pred_region
      _
    $region17: #{tpu_custom_call.1} parent=1 // pred_fallthru
      _
    // Predicated region
    $region18: #{tpu_custom_call.1} parent=1 // pred_check
      _
    $region19: #{tpu_custom_call.1} parent=1 // pred_check_branch
      %24 = sbr.rel (0) target = $region21
    $region20: #{tpu_custom_call.1} parent=1 // pred_region
      _
    $region21: #{tpu_custom_call.1} parent=1 // pred_fallthru
      _
    %v25 = vld [vmem:[%s0] sm:$0xff]
    %v26 = vld [vmem:[%s0 + $0x8] sm:$0x3f]
    %v27 = vld [vmem:[%s0 + $0x10] sm:$0xff]
    %v28 = vld [vmem:[%s0 + $0x18] sm:$0x3f]
    %v29 = vld [vmem:[%s1] sm:$0x1]
    %v30 = vld [vmem:[%s2] sm:$0x1]
    %vm31 = vcmask 261120
    %v32 = vsel %vm31, %v25, 0.0
    %33 = vadd.xlane.f32.xlu0 %v32
    %v34 = vpop.xlane.xlu0 %33
    %vm35 = vcmask 259072
    %v36 = vsel %vm35, %v26, 0.0
    %37 = vadd.xlane.f32.xlu0 %v36
    %v38 = vpop.xlane.xlu0 %37
    %v39 = vsel %vm31, %v27, 0.0
    %40 = vadd.xlane.f32.xlu0 %v39
    %v41 = vpop.xlane.xlu0 %40
    %v42 = vsel %vm35, %v28, 0.0
    %43 = vadd.xlane.f32.xlu0 %v42
    %v44 = vpop.xlane.xlu0 %43
    %v45 = vrcp.pop 32.0
    %v46 = vmul.f32 32.0, %v45
    %v47 = vsub.f32 1.0, %v46
    %v48 = vmul.f32 %v45, %v47
    %v49 = vadd.f32 %v45, %v48
    %vm50 = vweird.f32 %v45
    %v51 = vsel %vm50, %v45, %v49
    %v52 = vmul.f32 %v34, %v51
    %v53 = vmul.f32 %v38, %v51
    %v54 = vmul.f32 %v41, %v51
    %v55 = vmul.f32 %v44, %v51
    %v56 = vsub.f32 %v25, %v52
    %v57 = vsub.f32 %v26, %v53
    %v58 = vsub.f32 %v27, %v54
    %v59 = vsub.f32 %v28, %v55
    %v60 = vmul.f32 %v56, %v56
    %v61 = vmul.f32 %v57, %v57
    %v62 = vmul.f32 %v58, %v58
    %v63 = vmul.f32 %v59, %v59
    %v64 = vsel %vm31, %v60, 0.0
    %65 = vadd.xlane.f32.xlu0 %v64
    %v66 = vpop.xlane.xlu0 %65
    %v67 = vsel %vm35, %v61, 0.0
    %68 = vadd.xlane.f32.xlu0 %v67
    %v69 = vpop.xlane.xlu0 %68
    %v70 = vsel %vm31, %v62, 0.0
    %71 = vadd.xlane.f32.xlu0 %v70
    %v72 = vpop.xlane.xlu0 %71
    %v73 = vsel %vm35, %v63, 0.0
    %74 = vadd.xlane.f32.xlu0 %v73
    %v75 = vpop.xlane.xlu0 %74
    %v76 = vmul.f32 %v66, %v51
    %v77 = vmul.f32 %v69, %v51
    %v78 = vmul.f32 %v72, %v51
    %v79 = vmul.f32 %v75, %v51
    %v80 = vadd.f32 %v76, 1e-05
    %v81 = vadd.f32 %v77, 1e-05
    %v82 = vadd.f32 %v78, 1e-05
    %v83 = vadd.f32 %v79, 1e-05
    %v84 = vrsqrt.pop %v80
    %v85 = vmul.f32 %v84, %v80
    %v86 = vmul.f32 %v85, %v84
    %v87 = vmul.f32 0.5, %v86
    %v88 = vsub.f32 1.5, %v87
    %v89 = vmul.f32 %v84, %v88
    %vm90 = vweird.f32 %v80
    %vm91 = vweird.f32 %v84
    %vm92 = vmor %vm90, %vm91
    %v93 = vsel %vm92, %v84, %v89
    %v94 = vrsqrt.pop %v81
    %v95 = vmul.f32 %v94, %v81
    %v96 = vmul.f32 %v95, %v94
    %v97 = vmul.f32 0.5, %v96
    %v98 = vsub.f32 1.5, %v97
    %v99 = vmul.f32 %v94, %v98
    %vm100 = vweird.f32 %v81
    %vm101 = vweird.f32 %v94
    %vm102 = vmor %vm100, %vm101
    %v103 = vsel %vm102, %v94, %v99
    %v104 = vrsqrt.pop %v82
    %v105 = vmul.f32 %v104, %v82
    %v106 = vmul.f32 %v105, %v104
    %v107 = vmul.f32 0.5, %v106
    %v108 = vsub.f32 1.5, %v107
    %v109 = vmul.f32 %v104, %v108
    %vm110 = vweird.f32 %v82
    %vm111 = vweird.f32 %v104
    %vm112 = vmor %vm110, %vm111
    %v113 = vsel %vm112, %v104, %v109
    %v114 = vrsqrt.pop %v83
    %v115 = vmul.f32 %v114, %v83
    %v116 = vmul.f32 %v115, %v114
    %v117 = vmul.f32 0.5, %v116
    %v118 = vsub.f32 1.5, %v117
    %v119 = vmul.f32 %v114, %v118
    %vm120 = vweird.f32 %v83
    %vm121 = vweird.f32 %v114
    %vm122 = vmor %vm120, %vm121
    %v123 = vsel %vm122, %v114, %v119
    %v124 = vmul.f32 %v56, %v93
    %v125 = vmul.f32 %v57, %v103
    %v126 = vmul.f32 %v58, %v113
    %v127 = vmul.f32 %v59, %v123
    %v129 = vperm.slane %v29, 0
    %v131 = vmul.f32 %v124, %v129
    %v132 = vmul.f32 %v125, %v129
    %v133 = vmul.f32 %v126, %v129
    %v134 = vmul.f32 %v127, %v129
    %v136 = vperm.slane %v30, 0
    %v138 = vadd.f32 %v131, %v136
    %v139 = vadd.f32 %v132, %v136
    %v140 = vadd.f32 %v133, %v136
    %v141 = vadd.f32 %v134, %v136
    %vm142 = vcmask 254976
    %143 = vst.msk [vmem:[#allocation2] sm:$0x3] %vm142, 0.0
    %144 = vst.msk [vmem:[#allocation2 + $0x10] sm:$0x3] %vm142, 0.0
    %145 = vst.msk [vmem:[#allocation2 + $0x2] sm:$0xff] %vm31, %v138
    %146 = vst.msk [vmem:[#allocation2 + $0xa] sm:$0x3f] %vm35, %v139
    %147 = vst.msk [vmem:[#allocation2 + $0x12] sm:$0xff] %vm31, %v140
    %148 = vst.msk [vmem:[#allocation2 + $0x1a] sm:$0x3f] %vm35, %v141
    %v149 = vlaneseq
    %v150 = vshrl.u32 %v149, 7
    %v151 = vlaneseq
    %v152 = vand.u32 %v151, 127
    %v153 = vadd.s32 %v152, 2
    %v154 = vmul.u32 %v150, 4
    %vm155 = vcmp.ge.s32.totalorder %v153, %v154
    %v156 = vadd.s32 %v150, 1
    %v157 = vmul.u32 %v156, 4
    %vm158 = vcmp.lt.s32.totalorder %v153, %v157
    %vm159 = vmand %vm155, %vm158
    %v160 = vsel %vm159, 1, 0
    %v161 = vcvt.s32.f32 %v160
    %v162 = vmul.f32 %v161, 0.25
    %vm163 = vcmask 113664
    %v165 = vsel %vm163, %v162, 0
    %vm167 = vcmask 1045504
    %v169 = vsel %vm167, %v139, 0
    %171 = vmatpush.msra.mxu0 0.0
    %172 = vmatpush.msra.mxu0 0.0
    %173 = vmatpush.msra.mxu0 0.0
    %174 = vmatpush.msra.mxu0 0.0
    %175 = vmatpush.msra.mxu0 0.0
    %176 = vmatpush.msra.mxu0 0.0
    %177 = vmatpush.msra.mxu0 0.0
    %178 = vmatpush.msra.mxu0 0.0
    %179 = vmatpush.msra.mxu0 0.0
    %180 = vmatpush.msra.mxu0 0.0
    %181 = vmatpush.msra.mxu0 0.0
    %182 = vmatpush.msra.mxu0 0.0
    %183 = vmatpush.msra.mxu0 0.0
    %184 = vmatpush.msra.mxu0 0.0
    %185 = vmatpush.msra.mxu0 %v169
    %186 = vmatpush.msra.mxu0 %v138
    %187 = vmatmul.f32.gmra.mxu0 %v165
    %v188 = vpop.f32.mrf.mxu0
    %v189 = vadd.f32 0.0, %v188
    %190 = vdwg.mxu0
    %vm191 = vcmask 257024
    %192 = vst.msk [vmem:[#allocation4] sm:$0xf] %vm191, %v189
    %v194 = vsel %vm167, %v141, 0
    %196 = vmatpush.msra.mxu0 0.0
    %197 = vmatpush.msra.mxu0 0.0
    %198 = vmatpush.msra.mxu0 0.0
    %199 = vmatpush.msra.mxu0 0.0
    %200 = vmatpush.msra.mxu0 0.0
    %201 = vmatpush.msra.mxu0 0.0
    %202 = vmatpush.msra.mxu0 0.0
    %203 = vmatpush.msra.mxu0 0.0
    %204 = vmatpush.msra.mxu0 0.0
    %205 = vmatpush.msra.mxu0 0.0
    %206 = vmatpush.msra.mxu0 0.0
    %207 = vmatpush.msra.mxu0 0.0
    %208 = vmatpush.msra.mxu0 0.0
    %209 = vmatpush.msra.mxu0 0.0
    %210 = vmatpush.msra.mxu0 %v194
    %211 = vmatpush.msra.mxu0 %v140
    %212 = vmatmul.f32.gmra.mxu0 %v165
    %v213 = vpop.f32.mrf.mxu0
    %v214 = vadd.f32 0.0, %v213
    %215 = vdwg.mxu0
    %s216 = scalar_lea.vmem [#allocation4], 4
    %217 = vst.msk [vmem:[%s216] sm:$0xf] %vm191, %v214
    %v218 = vld [vmem:[%s3] sm:$0xff]
    %v219 = vld [vmem:[%s3 + $0x8] sm:$0xff]
    %v220 = vld [vmem:[%s3 + $0x10] sm:$0xff]
    %v221 = vld [vmem:[%s3 + $0x18] sm:$0xff]
    %v223 = vsel %vm31, %v189, 0
    %225 = vmatpush.msra.mxu0 0.0
    %226 = vmatpush.msra.mxu0 0.0
    %227 = vmatpush.msra.mxu0 0.0
    %228 = vmatpush.msra.mxu0 0.0
    %229 = vmatpush.msra.mxu0 0.0
    %230 = vmatpush.msra.mxu0 0.0
    %231 = vmatpush.msra.mxu0 0.0
    %232 = vmatpush.msra.mxu0 0.0
    %233 = vmatpush.msra.mxu0 0.0
    %234 = vmatpush.msra.mxu0 0.0
    %235 = vmatpush.msra.mxu0 0.0
    %236 = vmatpush.msra.mxu0 0.0
    %237 = vmatpush.msra.mxu0 %v221
    %238 = vmatpush.msra.mxu0 %v220
    %239 = vmatpush.msra.mxu0 %v219
    %240 = vmatpush.msra.mxu0 %v218
    %241 = vmatmul.f32.gmra.mxu0 %v223
    %v242 = vpop.f32.mrf.mxu0
    %v243 = vadd.f32 0.0, %v242
    %244 = vdwg.mxu0
    %v245 = vmul.f32 %v243, 0.35355338
    %v246 = vld [vmem:[%s4] sm:$0xff]
    %v247 = vld [vmem:[%s4 + $0x8] sm:$0xff]
    %v248 = vld [vmem:[%s4 + $0x10] sm:$0xff]
    %v249 = vld [vmem:[%s4 + $0x18] sm:$0xff]
    %250 = vmatpush.msra.mxu0 0.0
    %251 = vmatpush.msra.mxu0 0.0
    %252 = vmatpush.msra.mxu0 0.0
    %253 = vmatpush.msra.mxu0 0.0
    %254 = vmatpush.msra.mxu0 0.0
    %255 = vmatpush.msra.mxu0 0.0
    %256 = vmatpush.msra.mxu0 0.0
    %257 = vmatpush.msra.mxu0 0.0
    %258 = vmatpush.msra.mxu0 0.0
    %259 = vmatpush.msra.mxu0 0.0
    %260 = vmatpush.msra.mxu0 0.0
    %261 = vmatpush.msra.mxu0 0.0
    %262 = vmatpush.msra.mxu0 %v249
    %263 = vmatpush.msra.mxu0 %v248
    %264 = vmatpush.msra.mxu0 %v247
    %265 = vmatpush.msra.mxu0 %v246
    %266 = vmatmul.f32.gmra.mxu0 %v223
    %v267 = vpop.f32.mrf.mxu0
    %v268 = vadd.f32 0.0, %v267
    %269 = vdwg.mxu0
    %vm270 = vcmask 64512
    %v272 = vsel %vm270, %v245, 0
    %v275 = vsel %vm270, %v268, 0
    %277 = vmatpush.xpose.msra.mxu0 0.0
    %278 = vmatpush.xpose.msra.mxu0 0.0
    %279 = vmatpush.xpose.msra.mxu0 0.0
    %280 = vmatpush.xpose.msra.mxu0 0.0
    %281 = vmatpush.xpose.msra.mxu0 0.0
    %282 = vmatpush.xpose.msra.mxu0 0.0
    %283 = vmatpush.xpose.msra.mxu0 0.0
    %284 = vmatpush.xpose.msra.mxu0 0.0
    %285 = vmatpush.xpose.msra.mxu0 0.0
    %286 = vmatpush.xpose.msra.mxu0 0.0
    %287 = vmatpush.xpose.msra.mxu0 0.0
    %288 = vmatpush.xpose.msra.mxu0 0.0
    %289 = vmatpush.xpose.msra.mxu0 0.0
    %290 = vmatpush.xpose.msra.mxu0 0.0
    %291 = vmatpush.xpose.msra.mxu0 0.0
    %292 = vmatpush.xpose.msra.mxu0 %v275
    %293 = vmatmul.f32.gmra.mxu0 %v272
    %v294 = vpop.f32.mrf.mxu0
    %v295 = vadd.f32 0.0, %v294
    %296 = vdwg.mxu0
    %vm297 = vcmask 27648
    %v298 = vsel %vm297, %v295, -inf
    %299 = vmax.xlane.f32.xlu0 %v298
    %v300 = vpop.xlane.xlu0 %299
    %v301 = vsub.f32 %v295, %v300
    %v302 = vmul.f32 %v301, 1.442695
    %v303 = vpow.pop %v302
    %v304 = vsel %vm297, %v303, 0.0
    %305 = vadd.xlane.f32.xlu0 %v304
    %v306 = vpop.xlane.xlu0 %305
    %v307 = vrcp.pop %v306
    %v308 = vmul.f32 %v306, %v307
    %v309 = vsub.f32 1.0, %v308
    %v310 = vmul.f32 %v307, %v309
    %v311 = vadd.f32 %v307, %v310
    %vm312 = vweird.f32 %v306
    %vm313 = vweird.f32 %v307
    %vm314 = vmor %vm312, %vm313
    %v315 = vsel %vm314, %v307, %v311
    %v316 = vand.u32 2147483647, %v306
    %vm317 = vcmp.eq.f32.partialorder %v316, 8.507059e+37
    %v318 = vand.u32 %v306, 2147483648
    %v319 = vor.u32 1.1754944e-38, %v318
    %v320 = vsel %vm317, %v319, %v315
    %v321 = vmul.f32 %v303, %v320
    %v322 = vand.u32 2147483647, %v321
    %v323 = vsel %vm297, %v322, 0.0
    %324 = vadd.xlane.f32.xlu0 %v323
    %v325 = vpop.xlane.xlu0 %324
    %vm326 = vcmask 1043456
    %v327 = vsel %vm326, %v325, -inf
    %v328 = vrot.slane %v327, 4
    %v329 = vmax.f32 %v327, %v328
    %v330 = vrot.slane %v329, 2
    %v331 = vmax.f32 %v329, %v330
    %v332 = vrot.slane %v331, 1
    %v333 = vmax.f32 %v331, %v332
    %s334 = vtos %v333
    %v335 = vrot.slane %v323, 4
    %v336 = vadd.f32 %v323, %v335
    %v337 = vrot.slane %v336, 2
    %v338 = vadd.f32 %v336, %v337
    %v339 = vrot.slane %v338, 1
    %v340 = vadd.f32 %v338, %v339
    %vm341 = vcmask 31744
    %v342 = vsel %vm341, %v340, -inf
    %343 = vmax.xlane.f32.xlu0 %v342
    %v344 = vpop.xlane.xlu0 %343
    %s345 = vtos %v344
    %s346 = scalar_lea.vmem %s3, 32
    %v347 = vld [vmem:[%s346] sm:$0xff]
    %v348 = vld [vmem:[%s346 + $0x8] sm:$0xff]
    %v349 = vld [vmem:[%s346 + $0x10] sm:$0xff]
    %v350 = vld [vmem:[%s346 + $0x18] sm:$0xff]
    %351 = vmatpush.msra.mxu0 0.0
    %352 = vmatpush.msra.mxu0 0.0
    %353 = vmatpush.msra.mxu0 0.0
    %354 = vmatpush.msra.mxu0 0.0
    %355 = vmatpush.msra.mxu0 0.0
    %356 = vmatpush.msra.mxu0 0.0
    %357 = vmatpush.msra.mxu0 0.0
    %358 = vmatpush.msra.mxu0 0.0
    %359 = vmatpush.msra.mxu0 0.0
    %360 = vmatpush.msra.mxu0 0.0
    %361 = vmatpush.msra.mxu0 0.0
    %362 = vmatpush.msra.mxu0 0.0
    %363 = vmatpush.msra.mxu0 %v350
    %364 = vmatpush.msra.mxu0 %v349
    %365 = vmatpush.msra.mxu0 %v348
    %366 = vmatpush.msra.mxu0 %v347
    %367 = vmatmul.f32.gmra.mxu0 %v223
    %v368 = vpop.f32.mrf.mxu0
    %v369 = vadd.f32 0.0, %v368
    %370 = vdwg.mxu0
    %v371 = vmul.f32 %v369, 0.35355338
    %s372 = scalar_lea.vmem %s4, 32
    %v373 = vld [vmem:[%s372] sm:$0xff]
    %v374 = vld [vmem:[%s372 + $0x8] sm:$0xff]
    %v375 = vld [vmem:[%s372 + $0x10] sm:$0xff]
    %v376 = vld [vmem:[%s372 + $0x18] sm:$0xff]
    %377 = vmatpush.msra.mxu0 0.0
    %378 = vmatpush.msra.mxu0 0.0
    %379 = vmatpush.msra.mxu0 0.0
    %380 = vmatpush.msra.mxu0 0.0
    %381 = vmatpush.msra.mxu0 0.0
    %382 = vmatpush.msra.mxu0 0.0
    %383 = vmatpush.msra.mxu0 0.0
    %384 = vmatpush.msra.mxu0 0.0
    %385 = vmatpush.msra.mxu0 0.0
    %386 = vmatpush.msra.mxu0 0.0
    %387 = vmatpush.msra.mxu0 0.0
    %388 = vmatpush.msra.mxu0 0.0
    %389 = vmatpush.msra.mxu0 %v376
    %390 = vmatpush.msra.mxu0 %v375
    %391 = vmatpush.msra.mxu0 %v374
    %392 = vmatpush.msra.mxu0 %v373
    %393 = vmatmul.f32.gmra.mxu0 %v223
    %v394 = vpop.f32.mrf.mxu0
    %v395 = vadd.f32 0.0, %v394
    %396 = vdwg.mxu0
    %v398 = vsel %vm270, %v371, 0
    %v401 = vsel %vm270, %v395, 0
    %403 = vmatpush.xpose.msra.mxu0 0.0
    %404 = vmatpush.xpose.msra.mxu0 0.0
    %405 = vmatpush.xpose.msra.mxu0 0.0
    %406 = vmatpush.xpose.msra.mxu0 0.0
    %407 = vmatpush.xpose.msra.mxu0 0.0
    %408 = vmatpush.xpose.msra.mxu0 0.0
    %409 = vmatpush.xpose.msra.mxu0 0.0
    %410 = vmatpush.xpose.msra.mxu0 0.0
    %411 = vmatpush.xpose.msra.mxu0 0.0
    %412 = vmatpush.xpose.msra.mxu0 0.0
    %413 = vmatpush.xpose.msra.mxu0 0.0
    %414 = vmatpush.xpose.msra.mxu0 0.0
    %415 = vmatpush.xpose.msra.mxu0 0.0
    %416 = vmatpush.xpose.msra.mxu0 0.0
    %417 = vmatpush.xpose.msra.mxu0 0.0
    %418 = vmatpush.xpose.msra.mxu0 %v401
    %419 = vmatmul.f32.gmra.mxu0 %v398
    %v420 = vpop.f32.mrf.mxu0
    %v421 = vadd.f32 0.0, %v420
    %422 = vdwg.mxu0
    %v423 = vsel %vm297, %v421, -inf
    %424 = vmax.xlane.f32.xlu0 %v423
    %v425 = vpop.xlane.xlu0 %424
    %v426 = vsub.f32 %v421, %v425
    %v427 = vmul.f32 %v426, 1.442695
    %v428 = vpow.pop %v427
    %v429 = vsel %vm297, %v428, 0.0
    %430 = vadd.xlane.f32.xlu0 %v429
    %v431 = vpop.xlane.xlu0 %430
    %v432 = vrcp.pop %v431
    %v433 = vmul.f32 %v431, %v432
    %v434 = vsub.f32 1.0, %v433
    %v435 = vmul.f32 %v432, %v434
    %v436 = vadd.f32 %v432, %v435
    %vm437 = vweird.f32 %v431
    %vm438 = vweird.f32 %v432
    %vm439 = vmor %vm437, %vm438
    %v440 = vsel %vm439, %v432, %v436
    %v441 = vand.u32 2147483647, %v431
    %vm442 = vcmp.eq.f32.partialorder %v441, 8.507059e+37
    %v443 = vand.u32 %v431, 2147483648
    %v444 = vor.u32 1.1754944e-38, %v443
    %v445 = vsel %vm442, %v444, %v440
    %v446 = vmul.f32 %v428, %v445
    %v447 = vand.u32 2147483647, %v446
    %v448 = vsel %vm297, %v447, 0.0
    %449 = vadd.xlane.f32.xlu0 %v448
    %v450 = vpop.xlane.xlu0 %449
    %v451 = vsel %vm326, %v450, -inf
    %v452 = vrot.slane %v451, 4
    %v453 = vmax.f32 %v451, %v452
    %v454 = vrot.slane %v453, 2
    %v455 = vmax.f32 %v453, %v454
    %v456 = vrot.slane %v455, 1
    %v457 = vmax.f32 %v455, %v456
    %s458 = vtos %v457
    %s459 = smax.f32 %s334, %s458
    %v460 = vrot.slane %v448, 4
    %v461 = vadd.f32 %v448, %v460
    %v462 = vrot.slane %v461, 2
    %v463 = vadd.f32 %v461, %v462
    %v464 = vrot.slane %v463, 1
    %v465 = vadd.f32 %v463, %v464
    %v466 = vsel %vm341, %v465, -inf
    %467 = vmax.xlane.f32.xlu0 %v466
    %v468 = vpop.xlane.xlu0 %467
    %s469 = vtos %v468
    %s470 = smax.f32 %s345, %s469
    %s471 = scalar_lea.vmem %s3, 64
    %v472 = vld [vmem:[%s471] sm:$0xff]
    %v473 = vld [vmem:[%s471 + $0x8] sm:$0xff]
    %v474 = vld [vmem:[%s471 + $0x10] sm:$0xff]
    %v475 = vld [vmem:[%s471 + $0x18] sm:$0xff]
    %476 = vmatpush.msra.mxu0 0.0
    %477 = vmatpush.msra.mxu0 0.0
    %478 = vmatpush.msra.mxu0 0.0
    %479 = vmatpush.msra.mxu0 0.0
    %480 = vmatpush.msra.mxu0 0.0
    %481 = vmatpush.msra.mxu0 0.0
    %482 = vmatpush.msra.mxu0 0.0
    %483 = vmatpush.msra.mxu0 0.0
    %484 = vmatpush.msra.mxu0 0.0
    %485 = vmatpush.msra.mxu0 0.0
    %486 = vmatpush.msra.mxu0 0.0
    %487 = vmatpush.msra.mxu0 0.0
    %488 = vmatpush.msra.mxu0 %v475
    %489 = vmatpush.msra.mxu0 %v474
    %490 = vmatpush.msra.mxu0 %v473
    %491 = vmatpush.msra.mxu0 %v472
    %492 = vmatmul.f32.gmra.mxu0 %v223
    %v493 = vpop.f32.mrf.mxu0
    %v494 = vadd.f32 0.0, %v493
    %495 = vdwg.mxu0
    %v496 = vmul.f32 %v494, 0.35355338
    %s497 = scalar_lea.vmem %s4, 64
    %v498 = vld [vmem:[%s497] sm:$0xff]
    %v499 = vld [vmem:[%s497 + $0x8] sm:$0xff]
    %v500 = vld [vmem:[%s497 + $0x10] sm:$0xff]
    %v501 = vld [vmem:[%s497 + $0x18] sm:$0xff]
    %502 = vmatpush.msra.mxu0 0.0
    %503 = vmatpush.msra.mxu0 0.0
    %504 = vmatpush.msra.mxu0 0.0
    %505 = vmatpush.msra.mxu0 0.0
    %506 = vmatpush.msra.mxu0 0.0
    %507 = vmatpush.msra.mxu0 0.0
    %508 = vmatpush.msra.mxu0 0.0
    %509 = vmatpush.msra.mxu0 0.0
    %510 = vmatpush.msra.mxu0 0.0
    %511 = vmatpush.msra.mxu0 0.0
    %512 = vmatpush.msra.mxu0 0.0
    %513 = vmatpush.msra.mxu0 0.0
    %514 = vmatpush.msra.mxu0 %v501
    %515 = vmatpush.msra.mxu0 %v500
    %516 = vmatpush.msra.mxu0 %v499
    %517 = vmatpush.msra.mxu0 %v498
    %518 = vmatmul.f32.gmra.mxu0 %v223
    %v519 = vpop.f32.mrf.mxu0
    %v520 = vadd.f32 0.0, %v519
    %521 = vdwg.mxu0
    %v523 = vsel %vm270, %v496, 0
    %v526 = vsel %vm270, %v520, 0
    %528 = vmatpush.xpose.msra.mxu0 0.0
    %529 = vmatpush.xpose.msra.mxu0 0.0
    %530 = vmatpush.xpose.msra.mxu0 0.0
    %531 = vmatpush.xpose.msra.mxu0 0.0
    %532 = vmatpush.xpose.msra.mxu0 0.0
    %533 = vmatpush.xpose.msra.mxu0 0.0
    %534 = vmatpush.xpose.msra.mxu0 0.0
    %535 = vmatpush.xpose.msra.mxu0 0.0
    %536 = vmatpush.xpose.msra.mxu0 0.0
    %537 = vmatpush.xpose.msra.mxu0 0.0
    %538 = vmatpush.xpose.msra.mxu0 0.0
    %539 = vmatpush.xpose.msra.mxu0 0.0
    %540 = vmatpush.xpose.msra.mxu0 0.0
    %541 = vmatpush.xpose.msra.mxu0 0.0
    %542 = vmatpush.xpose.msra.mxu0 0.0
    %543 = vmatpush.xpose.msra.mxu0 %v526
    %544 = vmatmul.f32.gmra.mxu0 %v523
    %v545 = vpop.f32.mrf.mxu0
    %v546 = vadd.f32 0.0, %v545
    %547 = vdwg.mxu0
    %v548 = vsel %vm297, %v546, -inf
    %549 = vmax.xlane.f32.xlu0 %v548
    %v550 = vpop.xlane.xlu0 %549
    %v551 = vsub.f32 %v546, %v550
    %v552 = vmul.f32 %v551, 1.442695
    %v553 = vpow.pop %v552
    %v554 = vsel %vm297, %v553, 0.0
    %555 = vadd.xlane.f32.xlu0 %v554
    %v556 = vpop.xlane.xlu0 %555
    %v557 = vrcp.pop %v556
    %v558 = vmul.f32 %v556, %v557
    %v559 = vsub.f32 1.0, %v558
    %v560 = vmul.f32 %v557, %v559
    %v561 = vadd.f32 %v557, %v560
    %vm562 = vweird.f32 %v556
    %vm563 = vweird.f32 %v557
    %vm564 = vmor %vm562, %vm563
    %v565 = vsel %vm564, %v557, %v561
    %v566 = vand.u32 2147483647, %v556
    %vm567 = vcmp.eq.f32.partialorder %v566, 8.507059e+37
    %v568 = vand.u32 %v556, 2147483648
    %v569 = vor.u32 1.1754944e-38, %v568
    %v570 = vsel %vm567, %v569, %v565
    %v571 = vmul.f32 %v553, %v570
    %v572 = vand.u32 2147483647, %v571
    %v573 = vsel %vm297, %v572, 0.0
    %574 = vadd.xlane.f32.xlu0 %v573
    %v575 = vpop.xlane.xlu0 %574
    %v576 = vsel %vm326, %v575, -inf
    %v577 = vrot.slane %v576, 4
    %v578 = vmax.f32 %v576, %v577
    %v579 = vrot.slane %v578, 2
    %v580 = vmax.f32 %v578, %v579
    %v581 = vrot.slane %v580, 1
    %v582 = vmax.f32 %v580, %v581
    %s583 = vtos %v582
    %s584 = smax.f32 %s459, %s583
    %v585 = vrot.slane %v573, 4
    %v586 = vadd.f32 %v573, %v585
    %v587 = vrot.slane %v586, 2
    %v588 = vadd.f32 %v586, %v587
    %v589 = vrot.slane %v588, 1
    %v590 = vadd.f32 %v588, %v589
    %v591 = vsel %vm341, %v590, -inf
    %592 = vmax.xlane.f32.xlu0 %v591
    %v593 = vpop.xlane.xlu0 %592
    %s594 = vtos %v593
    %s595 = smax.f32 %s470, %s594
    %s596 = scalar_lea.vmem %s3, 96
    %v597 = vld [vmem:[%s596] sm:$0xff]
    %v598 = vld [vmem:[%s596 + $0x8] sm:$0xff]
    %v599 = vld [vmem:[%s596 + $0x10] sm:$0xff]
    %v600 = vld [vmem:[%s596 + $0x18] sm:$0xff]
    %601 = vmatpush.msra.mxu0 0.0
    %602 = vmatpush.msra.mxu0 0.0
    %603 = vmatpush.msra.mxu0 0.0
    %604 = vmatpush.msra.mxu0 0.0
    %605 = vmatpush.msra.mxu0 0.0
    %606 = vmatpush.msra.mxu0 0.0
    %607 = vmatpush.msra.mxu0 0.0
    %608 = vmatpush.msra.mxu0 0.0
    %609 = vmatpush.msra.mxu0 0.0
    %610 = vmatpush.msra.mxu0 0.0
    %611 = vmatpush.msra.mxu0 0.0
    %612 = vmatpush.msra.mxu0 0.0
    %613 = vmatpush.msra.mxu0 %v600
    %614 = vmatpush.msra.mxu0 %v599
    %615 = vmatpush.msra.mxu0 %v598
    %616 = vmatpush.msra.mxu0 %v597
    %617 = vmatmul.f32.gmra.mxu0 %v223
    %v618 = vpop.f32.mrf.mxu0
    %v619 = vadd.f32 0.0, %v618
    %620 = vdwg.mxu0
    %v621 = vmul.f32 %v619, 0.35355338
    %s622 = scalar_lea.vmem %s4, 96
    %v623 = vld [vmem:[%s622] sm:$0xff]
    %v624 = vld [vmem:[%s622 + $0x8] sm:$0xff]
    %v625 = vld [vmem:[%s622 + $0x10] sm:$0xff]
    %v626 = vld [vmem:[%s622 + $0x18] sm:$0xff]
    %627 = vmatpush.msra.mxu0 0.0
    %628 = vmatpush.msra.mxu0 0.0
    %629 = vmatpush.msra.mxu0 0.0
    %630 = vmatpush.msra.mxu0 0.0
    %631 = vmatpush.msra.mxu0 0.0
    %632 = vmatpush.msra.mxu0 0.0
    %633 = vmatpush.msra.mxu0 0.0
    %634 = vmatpush.msra.mxu0 0.0
    %635 = vmatpush.msra.mxu0 0.0
    %636 = vmatpush.msra.mxu0 0.0
    %637 = vmatpush.msra.mxu0 0.0
    %638 = vmatpush.msra.mxu0 0.0
    %639 = vmatpush.msra.mxu0 %v626
    %640 = vmatpush.msra.mxu0 %v625
    %641 = vmatpush.msra.mxu0 %v624
    %642 = vmatpush.msra.mxu0 %v623
    %643 = vmatmul.f32.gmra.mxu0 %v223
    %v644 = vpop.f32.mrf.mxu0
    %v645 = vadd.f32 0.0, %v644
    %646 = vdwg.mxu0
    %v648 = vsel %vm270, %v621, 0
    %v651 = vsel %vm270, %v645, 0
    %653 = vmatpush.xpose.msra.mxu0 0.0
    %654 = vmatpush.xpose.msra.mxu0 0.0
    %655 = vmatpush.xpose.msra.mxu0 0.0
    %656 = vmatpush.xpose.msra.mxu0 0.0
    %657 = vmatpush.xpose.msra.mxu0 0.0
    %658 = vmatpush.xpose.msra.mxu0 0.0
    %659 = vmatpush.xpose.msra.mxu0 0.0
    %660 = vmatpush.xpose.msra.mxu0 0.0
    %661 = vmatpush.xpose.msra.mxu0 0.0
    %662 = vmatpush.xpose.msra.mxu0 0.0
    %663 = vmatpush.xpose.msra.mxu0 0.0
    %664 = vmatpush.xpose.msra.mxu0 0.0
    %665 = vmatpush.xpose.msra.mxu0 0.0
    %666 = vmatpush.xpose.msra.mxu0 0.0
    %667 = vmatpush.xpose.msra.mxu0 0.0
    %668 = vmatpush.xpose.msra.mxu0 %v651
    %669 = vmatmul.f32.gmra.mxu0 %v648
    %v670 = vpop.f32.mrf.mxu0
    %v671 = vadd.f32 0.0, %v670
    %672 = vdwg.mxu0
    %v673 = vsel %vm297, %v671, -inf
    %674 = vmax.xlane.f32.xlu0 %v673
    %v675 = vpop.xlane.xlu0 %674
    %v676 = vsub.f32 %v671, %v675
    %v677 = vmul.f32 %v676, 1.442695
    %v678 = vpow.pop %v677
    %v679 = vsel %vm297, %v678, 0.0
    %680 = vadd.xlane.f32.xlu0 %v679
    %v681 = vpop.xlane.xlu0 %680
    %v682 = vrcp.pop %v681
    %v683 = vmul.f32 %v681, %v682
    %v684 = vsub.f32 1.0, %v683
    %v685 = vmul.f32 %v682, %v684
    %v686 = vadd.f32 %v682, %v685
    %vm687 = vweird.f32 %v681
    %vm688 = vweird.f32 %v682
    %vm689 = vmor %vm687, %vm688
    %v690 = vsel %vm689, %v682, %v686
    %v691 = vand.u32 2147483647, %v681
    %vm692 = vcmp.eq.f32.partialorder %v691, 8.507059e+37
    %v693 = vand.u32 %v681, 2147483648
    %v694 = vor.u32 1.1754944e-38, %v693
    %v695 = vsel %vm692, %v694, %v690
    %v696 = vmul.f32 %v678, %v695
    %v697 = vand.u32 2147483647, %v696
    %v698 = vsel %vm297, %v697, 0.0
    %699 = vadd.xlane.f32.xlu0 %v698
    %v700 = vpop.xlane.xlu0 %699
    %v701 = vsel %vm326, %v700, -inf
    %v702 = vrot.slane %v701, 4
    %v703 = vmax.f32 %v701, %v702
    %v704 = vrot.slane %v703, 2
    %v705 = vmax.f32 %v703, %v704
    %v706 = vrot.slane %v705, 1
    %v707 = vmax.f32 %v705, %v706
    %s708 = vtos %v707
    %s709 = smax.f32 %s584, %s708
    %v710 = vrot.slane %v698, 4
    %v711 = vadd.f32 %v698, %v710
    %v712 = vrot.slane %v711, 2
    %v713 = vadd.f32 %v711, %v712
    %v714 = vrot.slane %v713, 1
    %v715 = vadd.f32 %v713, %v714
    %v716 = vsel %vm341, %v715, -inf
    %717 = vmax.xlane.f32.xlu0 %v716
    %v718 = vpop.xlane.xlu0 %717
    %s719 = vtos %v718
    %s720 = smax.f32 %s595, %s719
    %v722 = vsel %vm31, %v214, 0
    %724 = vmatpush.msra.mxu0 0.0
    %725 = vmatpush.msra.mxu0 0.0
    %726 = vmatpush.msra.mxu0 0.0
    %727 = vmatpush.msra.mxu0 0.0
    %728 = vmatpush.msra.mxu0 0.0
    %729 = vmatpush.msra.mxu0 0.0
    %730 = vmatpush.msra.mxu0 0.0
    %731 = vmatpush.msra.mxu0 0.0
    %732 = vmatpush.msra.mxu0 0.0
    %733 = vmatpush.msra.mxu0 0.0
    %734 = vmatpush.msra.mxu0 0.0
    %735 = vmatpush.msra.mxu0 0.0
    %736 = vmatpush.msra.mxu0 %v221
    %737 = vmatpush.msra.mxu0 %v220
    %738 = vmatpush.msra.mxu0 %v219
    %739 = vmatpush.msra.mxu0 %v218
    %740 = vmatmul.f32.gmra.mxu0 %v722
    %v741 = vpop.f32.mrf.mxu0
    %v742 = vadd.f32 0.0, %v741
    %743 = vdwg.mxu0
    %v744 = vmul.f32 %v742, 0.35355338
    %745 = vmatpush.msra.mxu0 0.0
    %746 = vmatpush.msra.mxu0 0.0
    %747 = vmatpush.msra.mxu0 0.0
    %748 = vmatpush.msra.mxu0 0.0
    %749 = vmatpush.msra.mxu0 0.0
    %750 = vmatpush.msra.mxu0 0.0
    %751 = vmatpush.msra.mxu0 0.0
    %752 = vmatpush.msra.mxu0 0.0
    %753 = vmatpush.msra.mxu0 0.0
    %754 = vmatpush.msra.mxu0 0.0
    %755 = vmatpush.msra.mxu0 0.0
    %756 = vmatpush.msra.mxu0 0.0
    %757 = vmatpush.msra.mxu0 %v249
    %758 = vmatpush.msra.mxu0 %v248
    %759 = vmatpush.msra.mxu0 %v247
    %760 = vmatpush.msra.mxu0 %v246
    %761 = vmatmul.f32.gmra.mxu0 %v722
    %v762 = vpop.f32.mrf.mxu0
    %v763 = vadd.f32 0.0, %v762
    %764 = vdwg.mxu0
    %v766 = vsel %vm270, %v744, 0
    %v769 = vsel %vm270, %v763, 0
    %771 = vmatpush.xpose.msra.mxu0 0.0
    %772 = vmatpush.xpose.msra.mxu0 0.0
    %773 = vmatpush.xpose.msra.mxu0 0.0
    %774 = vmatpush.xpose.msra.mxu0 0.0
    %775 = vmatpush.xpose.msra.mxu0 0.0
    %776 = vmatpush.xpose.msra.mxu0 0.0
    %777 = vmatpush.xpose.msra.mxu0 0.0
    %778 = vmatpush.xpose.msra.mxu0 0.0
    %779 = vmatpush.xpose.msra.mxu0 0.0
    %780 = vmatpush.xpose.msra.mxu0 0.0
    %781 = vmatpush.xpose.msra.mxu0 0.0
    %782 = vmatpush.xpose.msra.mxu0 0.0
    %783 = vmatpush.xpose.msra.mxu0 0.0
    %784 = vmatpush.xpose.msra.mxu0 0.0
    %785 = vmatpush.xpose.msra.mxu0 0.0
    %786 = vmatpush.xpose.msra.mxu0 %v769
    %787 = vmatmul.f32.gmra.mxu0 %v766
    %v788 = vpop.f32.mrf.mxu0
    %v789 = vadd.f32 0.0, %v788
    %790 = vdwg.mxu0
    %v791 = vsel %vm297, %v789, -inf
    %792 = vmax.xlane.f32.xlu0 %v791
    %v793 = vpop.xlane.xlu0 %792
    %v794 = vsub.f32 %v789, %v793
    %v795 = vmul.f32 %v794, 1.442695
    %v796 = vpow.pop %v795
    %v797 = vsel %vm297, %v796, 0.0
    %798 = vadd.xlane.f32.xlu0 %v797
    %v799 = vpop.xlane.xlu0 %798
    %v800 = vrcp.pop %v799
    %v801 = vmul.f32 %v799, %v800
    %v802 = vsub.f32 1.0, %v801
    %v803 = vmul.f32 %v800, %v802
    %v804 = vadd.f32 %v800, %v803
    %vm805 = vweird.f32 %v799
    %vm806 = vweird.f32 %v800
    %vm807 = vmor %vm805, %vm806
    %v808 = vsel %vm807, %v800, %v804
    %v809 = vand.u32 2147483647, %v799
    %vm810 = vcmp.eq.f32.partialorder %v809, 8.507059e+37
    %v811 = vand.u32 %v799, 2147483648
    %v812 = vor.u32 1.1754944e-38, %v811
    %v813 = vsel %vm810, %v812, %v808
    %v814 = vmul.f32 %v796, %v813
    %v815 = vand.u32 2147483647, %v814
    %v816 = vsel %vm297, %v815, 0.0
    %817 = vadd.xlane.f32.xlu0 %v816
    %v818 = vpop.xlane.xlu0 %817
    %v819 = vsel %vm326, %v818, -inf
    %v820 = vrot.slane %v819, 4
    %v821 = vmax.f32 %v819, %v820
    %v822 = vrot.slane %v821, 2
    %v823 = vmax.f32 %v821, %v822
    %v824 = vrot.slane %v823, 1
    %v825 = vmax.f32 %v823, %v824
    %s826 = vtos %v825
    %s827 = smax.f32 %s709, %s826
    %v828 = vrot.slane %v816, 4
    %v829 = vadd.f32 %v816, %v828
    %v830 = vrot.slane %v829, 2
    %v831 = vadd.f32 %v829, %v830
    %v832 = vrot.slane %v831, 1
    %v833 = vadd.f32 %v831, %v832
    %v834 = vsel %vm341, %v833, -inf
    %835 = vmax.xlane.f32.xlu0 %v834
    %v836 = vpop.xlane.xlu0 %835
    %s837 = vtos %v836
    %s838 = smax.f32 %s720, %s837
    %839 = vmatpush.msra.mxu0 0.0
    %840 = vmatpush.msra.mxu0 0.0
    %841 = vmatpush.msra.mxu0 0.0
    %842 = vmatpush.msra.mxu0 0.0
    %843 = vmatpush.msra.mxu0 0.0
    %844 = vmatpush.msra.mxu0 0.0
    %845 = vmatpush.msra.mxu0 0.0
    %846 = vmatpush.msra.mxu0 0.0
    %847 = vmatpush.msra.mxu0 0.0
    %848 = vmatpush.msra.mxu0 0.0
    %849 = vmatpush.msra.mxu0 0.0
    %850 = vmatpush.msra.mxu0 0.0
    %851 = vmatpush.msra.mxu0 %v350
    %852 = vmatpush.msra.mxu0 %v349
    %853 = vmatpush.msra.mxu0 %v348
    %854 = vmatpush.msra.mxu0 %v347
    %855 = vmatmul.f32.gmra.mxu0 %v722
    %v856 = vpop.f32.mrf.mxu0
    %v857 = vadd.f32 0.0, %v856
    %858 = vdwg.mxu0
    %v859 = vmul.f32 %v857, 0.35355338
    %860 = vmatpush.msra.mxu0 0.0
    %861 = vmatpush.msra.mxu0 0.0
    %862 = vmatpush.msra.mxu0 0.0
    %863 = vmatpush.msra.mxu0 0.0
    %864 = vmatpush.msra.mxu0 0.0
    %865 = vmatpush.msra.mxu0 0.0
    %866 = vmatpush.msra.mxu0 0.0
    %867 = vmatpush.msra.mxu0 0.0
    %868 = vmatpush.msra.mxu0 0.0
    %869 = vmatpush.msra.mxu0 0.0
    %870 = vmatpush.msra.mxu0 0.0
    %871 = vmatpush.msra.mxu0 0.0
    %872 = vmatpush.msra.mxu0 %v376
    %873 = vmatpush.msra.mxu0 %v375
    %874 = vmatpush.msra.mxu0 %v374
    %875 = vmatpush.msra.mxu0 %v373
    %876 = vmatmul.f32.gmra.mxu0 %v722
    %v877 = vpop.f32.mrf.mxu0
    %v878 = vadd.f32 0.0, %v877
    %879 = vdwg.mxu0
    %v881 = vsel %vm270, %v859, 0
    %v884 = vsel %vm270, %v878, 0
    %886 = vmatpush.xpose.msra.mxu0 0.0
    %887 = vmatpush.xpose.msra.mxu0 0.0
    %888 = vmatpush.xpose.msra.mxu0 0.0
    %889 = vmatpush.xpose.msra.mxu0 0.0
    %890 = vmatpush.xpose.msra.mxu0 0.0
    %891 = vmatpush.xpose.msra.mxu0 0.0
    %892 = vmatpush.xpose.msra.mxu0 0.0
    %893 = vmatpush.xpose.msra.mxu0 0.0
    %894 = vmatpush.xpose.msra.mxu0 0.0
    %895 = vmatpush.xpose.msra.mxu0 0.0
    %896 = vmatpush.xpose.msra.mxu0 0.0
    %897 = vmatpush.xpose.msra.mxu0 0.0
    %898 = vmatpush.xpose.msra.mxu0 0.0
    %899 = vmatpush.xpose.msra.mxu0 0.0
    %900 = vmatpush.xpose.msra.mxu0 0.0
    %901 = vmatpush.xpose.msra.mxu0 %v884
    %902 = vmatmul.f32.gmra.mxu0 %v881
    %v903 = vpop.f32.mrf.mxu0
    %v904 = vadd.f32 0.0, %v903
    %905 = vdwg.mxu0
    %v906 = vsel %vm297, %v904, -inf
    %907 = vmax.xlane.f32.xlu0 %v906
    %v908 = vpop.xlane.xlu0 %907
    %v909 = vsub.f32 %v904, %v908
    %v910 = vmul.f32 %v909, 1.442695
    %v911 = vpow.pop %v910
    %v912 = vsel %vm297, %v911, 0.0
    %913 = vadd.xlane.f32.xlu0 %v912
    %v914 = vpop.xlane.xlu0 %913
    %v915 = vrcp.pop %v914
    %v916 = vmul.f32 %v914, %v915
    %v917 = vsub.f32 1.0, %v916
    %v918 = vmul.f32 %v915, %v917
    %v919 = vadd.f32 %v915, %v918
    %vm920 = vweird.f32 %v914
    %vm921 = vweird.f32 %v915
    %vm922 = vmor %vm920, %vm921
    %v923 = vsel %vm922, %v915, %v919
    %v924 = vand.u32 2147483647, %v914
    %vm925 = vcmp.eq.f32.partialorder %v924, 8.507059e+37
    %v926 = vand.u32 %v914, 2147483648
    %v927 = vor.u32 1.1754944e-38, %v926
    %v928 = vsel %vm925, %v927, %v923
    %v929 = vmul.f32 %v911, %v928
    %v930 = vand.u32 2147483647, %v929
    %v931 = vsel %vm297, %v930, 0.0
    %932 = vadd.xlane.f32.xlu0 %v931
    %v933 = vpop.xlane.xlu0 %932
    %v934 = vsel %vm326, %v933, -inf
    %v935 = vrot.slane %v934, 4
    %v936 = vmax.f32 %v934, %v935
    %v937 = vrot.slane %v936, 2
    %v938 = vmax.f32 %v936, %v937
    %v939 = vrot.slane %v938, 1
    %v940 = vmax.f32 %v938, %v939
    %s941 = vtos %v940
    %s942 = smax.f32 %s827, %s941
    %v943 = vrot.slane %v931, 4
    %v944 = vadd.f32 %v931, %v943
    %v945 = vrot.slane %v944, 2
    %v946 = vadd.f32 %v944, %v945
    %v947 = vrot.slane %v946, 1
    %v948 = vadd.f32 %v946, %v947
    %v949 = vsel %vm341, %v948, -inf
    %950 = vmax.xlane.f32.xlu0 %v949
    %v951 = vpop.xlane.xlu0 %950
    %s952 = vtos %v951
    %s953 = smax.f32 %s838, %s952
    %954 = vmatpush.msra.mxu0 0.0
    %955 = vmatpush.msra.mxu0 0.0
    %956 = vmatpush.msra.mxu0 0.0
    %957 = vmatpush.msra.mxu0 0.0
    %958 = vmatpush.msra.mxu0 0.0
    %959 = vmatpush.msra.mxu0 0.0
    %960 = vmatpush.msra.mxu0 0.0
    %961 = vmatpush.msra.mxu0 0.0
    %962 = vmatpush.msra.mxu0 0.0
    %963 = vmatpush.msra.mxu0 0.0
    %964 = vmatpush.msra.mxu0 0.0
    %965 = vmatpush.msra.mxu0 0.0
    %966 = vmatpush.msra.mxu0 %v475
    %967 = vmatpush.msra.mxu0 %v474
    %968 = vmatpush.msra.mxu0 %v473
    %969 = vmatpush.msra.mxu0 %v472
    %970 = vmatmul.f32.gmra.mxu0 %v722
    %v971 = vpop.f32.mrf.mxu0
    %v972 = vadd.f32 0.0, %v971
    %973 = vdwg.mxu0
    %v974 = vmul.f32 %v972, 0.35355338
    %975 = vmatpush.msra.mxu0 0.0
    %976 = vmatpush.msra.mxu0 0.0
    %977 = vmatpush.msra.mxu0 0.0
    %978 = vmatpush.msra.mxu0 0.0
    %979 = vmatpush.msra.mxu0 0.0
    %980 = vmatpush.msra.mxu0 0.0
    %981 = vmatpush.msra.mxu0 0.0
    %982 = vmatpush.msra.mxu0 0.0
    %983 = vmatpush.msra.mxu0 0.0
    %984 = vmatpush.msra.mxu0 0.0
    %985 = vmatpush.msra.mxu0 0.0
    %986 = vmatpush.msra.mxu0 0.0
    %987 = vmatpush.msra.mxu0 %v501
    %988 = vmatpush.msra.mxu0 %v500
    %989 = vmatpush.msra.mxu0 %v499
    %990 = vmatpush.msra.mxu0 %v498
    %991 = vmatmul.f32.gmra.mxu0 %v722
    %v992 = vpop.f32.mrf.mxu0
    %v993 = vadd.f32 0.0, %v992
    %994 = vdwg.mxu0
    %v996 = vsel %vm270, %v974, 0
    %v999 = vsel %vm270, %v993, 0
    %1001 = vmatpush.xpose.msra.mxu0 0.0
    %1002 = vmatpush.xpose.msra.mxu0 0.0
    %1003 = vmatpush.xpose.msra.mxu0 0.0
    %1004 = vmatpush.xpose.msra.mxu0 0.0
    %1005 = vmatpush.xpose.msra.mxu0 0.0
    %1006 = vmatpush.xpose.msra.mxu0 0.0
    %1007 = vmatpush.xpose.msra.mxu0 0.0
    %1008 = vmatpush.xpose.msra.mxu0 0.0
    %1009 = vmatpush.xpose.msra.mxu0 0.0
    %1010 = vmatpush.xpose.msra.mxu0 0.0
    %1011 = vmatpush.xpose.msra.mxu0 0.0
    %1012 = vmatpush.xpose.msra.mxu0 0.0
    %1013 = vmatpush.xpose.msra.mxu0 0.0
    %1014 = vmatpush.xpose.msra.mxu0 0.0
    %1015 = vmatpush.xpose.msra.mxu0 0.0
    %1016 = vmatpush.xpose.msra.mxu0 %v999
    %1017 = vmatmul.f32.gmra.mxu0 %v996
    %v1018 = vpop.f32.mrf.mxu0
    %v1019 = vadd.f32 0.0, %v1018
    %1020 = vdwg.mxu0
    %v1021 = vsel %vm297, %v1019, -inf
    %1022 = vmax.xlane.f32.xlu0 %v1021
    %v1023 = vpop.xlane.xlu0 %1022
    %v1024 = vsub.f32 %v1019, %v1023
    %v1025 = vmul.f32 %v1024, 1.442695
    %v1026 = vpow.pop %v1025
    %v1027 = vsel %vm297, %v1026, 0.0
    %1028 = vadd.xlane.f32.xlu0 %v1027
    %v1029 = vpop.xlane.xlu0 %1028
    %v1030 = vrcp.pop %v1029
    %v1031 = vmul.f32 %v1029, %v1030
    %v1032 = vsub.f32 1.0, %v1031
    %v1033 = vmul.f32 %v1030, %v1032
    %v1034 = vadd.f32 %v1030, %v1033
    %vm1035 = vweird.f32 %v1029
    %vm1036 = vweird.f32 %v1030
    %vm1037 = vmor %vm1035, %vm1036
    %v1038 = vsel %vm1037, %v1030, %v1034
    %v1039 = vand.u32 2147483647, %v1029
    %vm1040 = vcmp.eq.f32.partialorder %v1039, 8.507059e+37
    %v1041 = vand.u32 %v1029, 2147483648
    %v1042 = vor.u32 1.1754944e-38, %v1041
    %v1043 = vsel %vm1040, %v1042, %v1038
    %v1044 = vmul.f32 %v1026, %v1043
    %v1045 = vand.u32 2147483647, %v1044
    %v1046 = vsel %vm297, %v1045, 0.0
    %1047 = vadd.xlane.f32.xlu0 %v1046
    %v1048 = vpop.xlane.xlu0 %1047
    %v1049 = vsel %vm326, %v1048, -inf
    %v1050 = vrot.slane %v1049, 4
    %v1051 = vmax.f32 %v1049, %v1050
    %v1052 = vrot.slane %v1051, 2
    %v1053 = vmax.f32 %v1051, %v1052
    %v1054 = vrot.slane %v1053, 1
    %v1055 = vmax.f32 %v1053, %v1054
    %s1056 = vtos %v1055
    %s1057 = smax.f32 %s942, %s1056
    %v1058 = vrot.slane %v1046, 4
    %v1059 = vadd.f32 %v1046, %v1058
    %v1060 = vrot.slane %v1059, 2
    %v1061 = vadd.f32 %v1059, %v1060
    %v1062 = vrot.slane %v1061, 1
    %v1063 = vadd.f32 %v1061, %v1062
    %v1064 = vsel %vm341, %v1063, -inf
    %1065 = vmax.xlane.f32.xlu0 %v1064
    %v1066 = vpop.xlane.xlu0 %1065
    %s1067 = vtos %v1066
    %s1068 = smax.f32 %s953, %s1067
    %1069 = vmatpush.msra.mxu0 0.0
    %1070 = vmatpush.msra.mxu0 0.0
    %1071 = vmatpush.msra.mxu0 0.0
    %1072 = vmatpush.msra.mxu0 0.0
    %1073 = vmatpush.msra.mxu0 0.0
    %1074 = vmatpush.msra.mxu0 0.0
    %1075 = vmatpush.msra.mxu0 0.0
    %1076 = vmatpush.msra.mxu0 0.0
    %1077 = vmatpush.msra.mxu0 0.0
    %1078 = vmatpush.msra.mxu0 0.0
    %1079 = vmatpush.msra.mxu0 0.0
    %1080 = vmatpush.msra.mxu0 0.0
    %1081 = vmatpush.msra.mxu0 %v600
    %1082 = vmatpush.msra.mxu0 %v599
    %1083 = vmatpush.msra.mxu0 %v598
    %1084 = vmatpush.msra.mxu0 %v597
    %1085 = vmatmul.f32.gmra.mxu0 %v722
    %v1086 = vpop.f32.mrf.mxu0
    %v1087 = vadd.f32 0.0, %v1086
    %1088 = vdwg.mxu0
    %v1089 = vmul.f32 %v1087, 0.35355338
    %1090 = vmatpush.msra.mxu0 0.0
    %1091 = vmatpush.msra.mxu0 0.0
    %1092 = vmatpush.msra.mxu0 0.0
    %1093 = vmatpush.msra.mxu0 0.0
    %1094 = vmatpush.msra.mxu0 0.0
    %1095 = vmatpush.msra.mxu0 0.0
    %1096 = vmatpush.msra.mxu0 0.0
    %1097 = vmatpush.msra.mxu0 0.0
    %1098 = vmatpush.msra.mxu0 0.0
    %1099 = vmatpush.msra.mxu0 0.0
    %1100 = vmatpush.msra.mxu0 0.0
    %1101 = vmatpush.msra.mxu0 0.0
    %1102 = vmatpush.msra.mxu0 %v626
    %1103 = vmatpush.msra.mxu0 %v625
    %1104 = vmatpush.msra.mxu0 %v624
    %1105 = vmatpush.msra.mxu0 %v623
    %1106 = vmatmul.f32.gmra.mxu0 %v722
    %v1107 = vpop.f32.mrf.mxu0
    %v1108 = vadd.f32 0.0, %v1107
    %1109 = vdwg.mxu0
    %v1111 = vsel %vm270, %v1089, 0
    %v1114 = vsel %vm270, %v1108, 0
    %1116 = vmatpush.xpose.msra.mxu0 0.0
    %1117 = vmatpush.xpose.msra.mxu0 0.0
    %1118 = vmatpush.xpose.msra.mxu0 0.0
    %1119 = vmatpush.xpose.msra.mxu0 0.0
    %1120 = vmatpush.xpose.msra.mxu0 0.0
    %1121 = vmatpush.xpose.msra.mxu0 0.0
    %1122 = vmatpush.xpose.msra.mxu0 0.0
    %1123 = vmatpush.xpose.msra.mxu0 0.0
    %1124 = vmatpush.xpose.msra.mxu0 0.0
    %1125 = vmatpush.xpose.msra.mxu0 0.0
    %1126 = vmatpush.xpose.msra.mxu0 0.0
    %1127 = vmatpush.xpose.msra.mxu0 0.0
    %1128 = vmatpush.xpose.msra.mxu0 0.0
    %1129 = vmatpush.xpose.msra.mxu0 0.0
    %1130 = vmatpush.xpose.msra.mxu0 0.0
    %1131 = vmatpush.xpose.msra.mxu0 %v1114
    %1132 = vmatmul.f32.gmra.mxu0 %v1111
    %v1133 = vpop.f32.mrf.mxu0
    %v1134 = vadd.f32 0.0, %v1133
    %1135 = vdwg.mxu0
    %v1136 = vsel %vm297, %v1134, -inf
    %1137 = vmax.xlane.f32.xlu0 %v1136
    %v1138 = vpop.xlane.xlu0 %1137
    %v1139 = vsub.f32 %v1134, %v1138
    %v1140 = vmul.f32 %v1139, 1.442695
    %v1141 = vpow.pop %v1140
    %v1142 = vsel %vm297, %v1141, 0.0
    %1143 = vadd.xlane.f32.xlu0 %v1142
    %v1144 = vpop.xlane.xlu0 %1143
    %v1145 = vrcp.pop %v1144
    %v1146 = vmul.f32 %v1144, %v1145
    %v1147 = vsub.f32 1.0, %v1146
    %v1148 = vmul.f32 %v1145, %v1147
    %v1149 = vadd.f32 %v1145, %v1148
    %vm1150 = vweird.f32 %v1144
    %vm1151 = vweird.f32 %v1145
    %vm1152 = vmor %vm1150, %vm1151
    %v1153 = vsel %vm1152, %v1145, %v1149
    %v1154 = vand.u32 2147483647, %v1144
    %vm1155 = vcmp.eq.f32.partialorder %v1154, 8.507059e+37
    %v1156 = vand.u32 %v1144, 2147483648
    %v1157 = vor.u32 1.1754944e-38, %v1156
    %v1158 = vsel %vm1155, %v1157, %v1153
    %v1159 = vmul.f32 %v1141, %v1158
    %v1160 = vand.u32 2147483647, %v1159
    %v1161 = vsel %vm297, %v1160, 0.0
    %1162 = vadd.xlane.f32.xlu0 %v1161
    %v1163 = vpop.xlane.xlu0 %1162
    %v1164 = vsel %vm326, %v1163, -inf
    %v1165 = vrot.slane %v1164, 4
    %v1166 = vmax.f32 %v1164, %v1165
    %v1167 = vrot.slane %v1166, 2
    %v1168 = vmax.f32 %v1166, %v1167
    %v1169 = vrot.slane %v1168, 1
    %v1170 = vmax.f32 %v1168, %v1169
    %s1171 = vtos %v1170
    %s1172 = smax.f32 %s1057, %s1171
    %v1173 = vrot.slane %v1161, 4
    %v1174 = vadd.f32 %v1161, %v1173
    %v1175 = vrot.slane %v1174, 2
    %v1176 = vadd.f32 %v1174, %v1175
    %v1177 = vrot.slane %v1176, 1
    %v1178 = vadd.f32 %v1176, %v1177
    %v1179 = vsel %vm341, %v1178, -inf
    %1180 = vmax.xlane.f32.xlu0 %v1179
    %v1181 = vpop.xlane.xlu0 %1180
    %s1182 = vtos %v1181
    %s1183 = smax.f32 %s1068, %s1182
    %s1184 = smul.f32 %s1172, %s1183
    %v1185 = vstv %s1184
    %vm1186 = vcmask 0
    %1187 = vst.msk [vmem:[#allocation6] sm:$0x1] %vm1186, %v1185
    // Predicated region
    $region22: #{tpu_custom_call.1} parent=1 // pred_check
      _
    $region23: #{tpu_custom_call.1} parent=1 // pred_check_branch
      %1189 = sbr.rel (0) target = $region25
    $region24: #{tpu_custom_call.1} parent=1 // pred_region
      %1191 = vsyncadd [#allocation3], 0
      %s1192 = sshll.u32 [#allocation2], 4
      %s1193 = int_to_ptr.vmem [resolvable:$true] %s1192
      %s1194 = sshll.u32 %s5, 4
      %s1195 = int_to_ptr.hbm [resolvable:$true] %s1194
      %1200 = dma.vmem_to_hbm [thread:$0]  %s1193, 512, %s1195, [#allocation3], 128, 128, 8
    $region25: #{tpu_custom_call.1} parent=1 // pred_fallthru
      _
    // Predicated region
    $region26: #{tpu_custom_call.1} parent=1 // pred_check
      _
    $region27: #{tpu_custom_call.1} parent=1 // pred_check_branch
      %1202 = sbr.rel (0) target = $region29
    $region28: #{tpu_custom_call.1} parent=1 // pred_region
      %1204 = vsyncadd [#allocation5], 0
      %s1205 = sshll.u32 [#allocation4], 4
      %s1206 = int_to_ptr.vmem [resolvable:$true] %s1205
      %s1207 = sshll.u32 %s6, 4
      %s1208 = int_to_ptr.hbm [resolvable:$true] %s1207
      %1213 = dma.vmem_to_hbm [thread:$0]  %s1206, 128, %s1208, [#allocation5], 64, 64, 4
    $region29: #{tpu_custom_call.1} parent=1 // pred_fallthru
      _
    // Predicated region
    $region30: #{tpu_custom_call.1} parent=1 // pred_check
      _
    $region31: #{tpu_custom_call.1} parent=1 // pred_check_branch
      %1215 = sbr.rel (0) target = $region33
    $region32: #{tpu_custom_call.1} parent=1 // pred_region
      %1217 = vsyncadd [#allocation5], 0
      %s1219 = sshll.u32 [#allocation6], 4
      %s1220 = int_to_ptr.vmem [resolvable:$true] %s1219
      %s1221 = sshll.u32 %s7, 4
      %s1222 = int_to_ptr.hbm [resolvable:$true] %s1221
      %1224 = dma.vmem_to_hbm [thread:$0]  %s1220, 16, %s1222, [#allocation5]
    $region33: #{tpu_custom_call.1} parent=1 // pred_fallthru
      _
    // Predicated region
    $region34: #{tpu_custom_call.1} parent=1 // pred_check
      _
    $region35: #{tpu_custom_call.1} parent=1 // pred_check_branch
      %1226 = sbr.rel (0) target = $region37
    $region36: #{tpu_custom_call.1} parent=1 // pred_region
      %1228 = dma.done [#allocation3], 512
    $region37: #{tpu_custom_call.1} parent=1 // pred_fallthru
      _
    // Predicated region
    $region38: #{tpu_custom_call.1} parent=1 // pred_check
      _
    $region39: #{tpu_custom_call.1} parent=1 // pred_check_branch
      %1230 = sbr.rel (0) target = $region41
    $region40: #{tpu_custom_call.1} parent=1 // pred_region
      %1232 = dma.done [#allocation5], 128
    $region41: #{tpu_custom_call.1} parent=1 // pred_fallthru
      _
    // Predicated region
    $region42: #{tpu_custom_call.1} parent=1 // pred_check
      _
    $region43: #{tpu_custom_call.1} parent=1 // pred_check_branch
      %1234 = sbr.rel (0) target = $region45
    $region44: #{tpu_custom_call.1} parent=1 // pred_region
      %1236 = dma.done [#allocation5], 16
    $region45: #{tpu_custom_call.1} parent=1 // pred_fallthru
      _
    %1237 = vsyncpa [#allocation3], 1
    %1238 = vsyncpa [#allocation5], 1

</llo_original>
